<compile_context>
chip_gen: v6e
topology: v6e:2x2x1
jax: 0.10.0
libtpu: 0.0.40
codegen_flags: <defaults>
</compile_context>

<pallas_src>
import functools

import jax
import jax.numpy as jnp
from jax.experimental import pallas as pl
from jax.experimental.pallas import tpu as pltpu


def _round_up(x, m):
    return (x + m - 1) // m * m


def aaembed_kernel(x_ref, w1_ref, b1_ref, w2_ref, b2_ref, w3_ref, o_ref,
                   pad_ref, *, H, W, Wpad):
    """Processes `nb` batch elements per grid step, entirely in VMEM.

    x_ref  : (nb, H*W, Cin)        -- channels-last, spatially flattened
    w1_ref : (Cin, Cmid)           -- 1x1 conv (BN1 scale pre-folded)
    w2_ref : (3, 3, Cmid, Cmid)    -- 3x3 conv, (ky, kx, cin, cout), BN2 scale pre-folded
    w3_ref : (Cmid, Cout)          -- 1x1 conv
    b1/b2  : (1, Cmid)             -- folded BatchNorm biases
    o_ref  : (nb, H, Wpad, Cout)   -- padded output (cols >= W are garbage, sliced off)
    pad_ref: ((H+3)*Wpad, Cmid)    -- flat zero-haloed activation buffer (VMEM scratch)
    """
    nb, HW, Cin = x_ref.shape
    Cmid = w1_ref.shape[1]
    HWp = H * Wpad
    PADN = pad_ref.shape[0]

    # ---- zero only the halo of the padded buffer (interior is fully overwritten) ----
    pad_ref[0:Wpad + 1, :] = jnp.zeros((Wpad + 1, Cmid), jnp.float32)
    gap = Wpad - W
    zgap = jnp.zeros((gap, Cmid), jnp.float32)
    for r in range(H - 1):
        off = (r + 1) * Wpad + W + 1
        pad_ref[off:off + gap, :] = zgap
    off = H * Wpad + W + 1
    pad_ref[off:PADN, :] = jnp.zeros((PADN - off, Cmid), jnp.float32)

    # ---- stage 1: conv1x1 (scale folded) + bias + ReLU, all nb images in one matmul ----
    x = x_ref[...].reshape(nb * HW, Cin)
    y1 = jnp.dot(x, w1_ref[...], preferred_element_type=jnp.float32)
    y1 = jnp.maximum(y1 + b1_ref[...], 0.0)

    for n in range(nb):
        # scatter image n's rows into the interior of the flat padded buffer
        for r in range(H):
            src = n * HW + r * W
            dst = (r + 1) * Wpad + 1
            pad_ref[dst:dst + W, :] = y1[src:src + W, :]

        # ---- stage 2: 3x3 SAME conv as 9 contiguous-slice MXU matmuls + bias + ReLU ----
        acc = jnp.dot(pad_ref[0:HWp, :], w2_ref[0, 0],
                      preferred_element_type=jnp.float32)
        for ky in range(3):
            for kx in range(3):
                if ky == 0 and kx == 0:
                    continue
                toff = ky * Wpad + kx
                acc = acc + jnp.dot(pad_ref[toff:toff + HWp, :], w2_ref[ky, kx],
                                    preferred_element_type=jnp.float32)
        y2 = jnp.maximum(acc + b2_ref[...], 0.0)

        # ---- stage 3: conv1x1 (no BN / ReLU), dense padded store ----
        y3 = jnp.dot(y2, w3_ref[...], preferred_element_type=jnp.float32)
        o_ref[n] = y3.reshape(H, Wpad, -1).astype(o_ref.dtype)


def _pick_block_batch(N, HW):
    """Images per grid step: keep >= 2 grid steps when possible (v7x has 2 TCs),
    then grow M = nb*H*W toward a full MXU pass (>=256 rows)."""
    best = 1
    for nb in range(1, N + 1):
        if N % nb:
            continue
        if N >= 2 and N // nb < 2:
            break
        best = nb
        if nb * HW >= 256:
            break
    return best


def aaembed_pallas(x_nchw, w1, s1, b1, w2, s2, b2, w3):
    """x_nchw: (N, Cin, H, W) float32, returns (N, Cout, H, W)."""
    N, Cin, H, W = x_nchw.shape
    Cmid = w1.shape[1]
    Cout = w3.shape[1]
    HW = H * W
    Wpad = _round_up(W + 2, 8)
    nb = _pick_block_batch(N, HW)

    # Fold BN scales into the conv weights (one-time, host side); biases stay.
    w1e = (w1 * s1.reshape(1, Cmid)).astype(jnp.float32)
    w2e = (w2 * s2.reshape(1, 1, 1, Cmid)).astype(jnp.float32)
    b1r = b1.reshape(1, Cmid).astype(jnp.float32)
    b2r = b2.reshape(1, Cmid).astype(jnp.float32)

    # NCHW -> (N, H*W, Cin): single fused XLA transpose+reshape copy.
    x_flat = jnp.transpose(x_nchw, (0, 2, 3, 1)).reshape(N, HW, Cin)

    pad_rows = (H + 3) * Wpad
    kernel = functools.partial(aaembed_kernel, H=H, W=W, Wpad=Wpad)

    flops = (2 * N * HW * Cin * Cmid
             + N * (9 * 2 * H * Wpad * Cmid * Cmid
                    + 2 * H * Wpad * Cmid * Cout))
    bytes_accessed = 4 * (x_flat.size + w1e.size + w2e.size + w3.size
                          + b1r.size + b2r.size + N * H * Wpad * Cout)

    grid_spec = pltpu.PrefetchScalarGridSpec(
        num_scalar_prefetch=0,
        grid=(N // nb,),
        in_specs=[
            pl.BlockSpec((nb, HW, Cin), lambda n: (n, 0, 0)),
            pl.BlockSpec((Cin, Cmid), lambda n: (0, 0)),
            pl.BlockSpec((1, Cmid), lambda n: (0, 0)),
            pl.BlockSpec((3, 3, Cmid, Cmid), lambda n: (0, 0, 0, 0)),
            pl.BlockSpec((1, Cmid), lambda n: (0, 0)),
            pl.BlockSpec((Cmid, Cout), lambda n: (0, 0)),
        ],
        out_specs=pl.BlockSpec((nb, H, Wpad, Cout), lambda n: (n, 0, 0, 0)),
        scratch_shapes=[pltpu.VMEM((pad_rows, Cmid), jnp.float32)],
    )

    out_pad = pl.pallas_call(
        kernel,
        out_shape=jax.ShapeDtypeStruct((N, H, Wpad, Cout), jnp.float32),
        grid_spec=grid_spec,
        compiler_params=pltpu.CompilerParams(
            dimension_semantics=("parallel",),
            vmem_limit_bytes=48 * 1024 * 1024),
        cost_estimate=pl.CostEstimate(flops=flops, transcendentals=0,
                                      bytes_accessed=bytes_accessed),
    )(x_flat, w1e, b1r, w2e, b2r, w3)

    # Drop pad columns and return NCHW (one fused slice+transpose copy).
    return jnp.transpose(out_pad[:, :, :W, :], (0, 3, 1, 2))


def aaembed_reference(x_nchw, w1, s1, b1, w2, s2, b2, w3):
    """Pure-JAX reference (lax.conv), NHWC internally, for correctness check."""
    dn = ('NHWC', 'HWIO', 'NHWC')
    Cin, Cmid = w1.shape
    Cout = w3.shape[1]
    x = jnp.transpose(x_nchw, (0, 2, 3, 1))
    y = jax.lax.conv_general_dilated(x, w1.reshape(1, 1, Cin, Cmid),
                                     (1, 1), 'VALID', dimension_numbers=dn)
    y = jnp.maximum(y * s1 + b1, 0.0)
    y = jax.lax.conv_general_dilated(y, w2, (1, 1), 'SAME',
                                     dimension_numbers=dn)
    y = jnp.maximum(y * s2 + b2, 0.0)
    y = jax.lax.conv_general_dilated(y, w3.reshape(1, 1, Cmid, Cout),
                                     (1, 1), 'VALID', dimension_numbers=dn)
    return jnp.transpose(y, (0, 3, 1, 2))


def fold_bn(gamma, beta, mean, var, eps=1e-5):
    scale = gamma / jnp.sqrt(var + eps)
    bias = beta - mean * scale
    return scale.reshape(1, -1), bias.reshape(1, -1)


if __name__ == "__main__":
    # Small shapes consistent with the module (scaled-down 1024->256->256->128):
    # num_input_channels=32, num_target_channels=8 => mid channels = 16.
    N, Cin, H, W = 2, 32, 8, 8
    Ctgt = 8
    Cmid = 2 * Ctgt

    key = jax.random.PRNGKey(0)
    ks = jax.random.split(key, 12)

    x = jax.random.normal(ks[0], (N, Cin, H, W), jnp.float32)

    # Conv weights (stored directly in kernel-friendly layouts).
    w1 = jax.random.normal(ks[1], (Cin, Cmid), jnp.float32) * 0.05
    w2 = jax.random.normal(ks[2], (3, 3, Cmid, Cmid), jnp.float32) * 0.05
    w3 = jax.random.normal(ks[3], (Cmid, Ctgt), jnp.float32) * 0.05

    # BatchNorm params (inference mode), deterministic.
    g1 = 1.0 + 0.1 * jax.random.normal(ks[4], (Cmid,), jnp.float32)
    be1 = 0.1 * jax.random.normal(ks[5], (Cmid,), jnp.float32)
    m1 = 0.1 * jax.random.normal(ks[6], (Cmid,), jnp.float32)
    v1 = jnp.abs(jax.random.normal(ks[7], (Cmid,), jnp.float32)) + 0.5
    g2 = 1.0 + 0.1 * jax.random.normal(ks[8], (Cmid,), jnp.float32)
    be2 = 0.1 * jax.random.normal(ks[9], (Cmid,), jnp.float32)
    m2 = 0.1 * jax.random.normal(ks[10], (Cmid,), jnp.float32)
    v2 = jnp.abs(jax.random.normal(ks[11], (Cmid,), jnp.float32)) + 0.5

    s1, b1 = fold_bn(g1, be1, m1, v1)
    s2, b2 = fold_bn(g2, be2, m2, v2)

    out = aaembed_pallas(x, w1, s1, b1, w2, s2, b2, w3)
    out = jax.block_until_ready(out)

    ref = aaembed_reference(x, w1, s1, b1, w2, s2, b2, w3)
    assert out.shape == (N, Ctgt, H, W), out.shape
    assert jnp.allclose(out, ref, atol=1e-4, rtol=1e-4), \
        float(jnp.max(jnp.abs(out - ref)))

    print("KERNEL_OK")
</pallas_src>

<mosaic_0001>
module attributes {stable_mosaic.version = 11 : i64} {
  func.func @aaembed_kernel(%arg0: i32, %arg1: memref<1x64x32xf32, #tpu.memory_space<vmem>>, %arg2: memref<32x16xf32, #tpu.memory_space<vmem>>, %arg3: memref<1x16xf32, #tpu.memory_space<vmem>>, %arg4: memref<3x3x16x16xf32, #tpu.memory_space<vmem>>, %arg5: memref<1x16xf32, #tpu.memory_space<vmem>>, %arg6: memref<16x8xf32, #tpu.memory_space<vmem>>, %arg7: memref<1x8x16x8xf32, #tpu.memory_space<vmem>>, %arg8: memref<176x16xf32, #tpu.memory_space<vmem>>) attributes {dimension_semantics = [#tpu.dimension_semantics<parallel>], iteration_bounds = array<i64: 2>, scalar_prefetch = 0 : i64, scratch_operands = 1 : i64, tpu.core_type = #tpu.core_type<tc>, window_params = [{transform_indices = @transform_0, window_bounds = array<i64: 1, 64, 32>}, {pipeline_mode = #tpu.pipeline_mode<synchronous>, transform_indices = @transform_1, window_bounds = array<i64: 32, 16>}, {pipeline_mode = #tpu.pipeline_mode<synchronous>, transform_indices = @transform_2, window_bounds = array<i64: 1, 16>}, {pipeline_mode = #tpu.pipeline_mode<synchronous>, transform_indices = @transform_3, window_bounds = array<i64: 3, 3, 16, 16>}, {pipeline_mode = #tpu.pipeline_mode<synchronous>, transform_indices = @transform_4, window_bounds = array<i64: 1, 16>}, {pipeline_mode = #tpu.pipeline_mode<synchronous>, transform_indices = @transform_5, window_bounds = array<i64: 16, 8>}, {transform_indices = @transform_6, window_bounds = array<i64: 1, 8, 16, 8>}]} {
    %cst = arith.constant 0.000000e+00 : f32
    %0 = vector.broadcast %cst : f32 to vector<17x16xf32>
    %c0 = arith.constant 0 : index
    %c0_0 = arith.constant 0 : index
    %1 = vector.load %arg8[%c0, %c0_0] : memref<176x16xf32, #tpu.memory_space<vmem>>, vector<17x16xf32>
    tpu.vector_store %arg8[%c0, %c0_0], %0 {strides = array<i32>} : memref<176x16xf32, #tpu.memory_space<vmem>>, vector<17x16xf32>,
    %cst_1 = arith.constant 0.000000e+00 : f32
    %2 = vector.broadcast %cst_1 : f32 to vector<8x16xf32>
    %c25 = arith.constant 25 : index
    %c0_2 = arith.constant 0 : index
    %3 = vector.load %arg8[%c25, %c0_2] : memref<176x16xf32, #tpu.memory_space<vmem>>, vector<8x16xf32>
    tpu.vector_store %arg8[%c25, %c0_2], %2 {strides = array<i32>} : memref<176x16xf32, #tpu.memory_space<vmem>>, vector<8x16xf32>,
    %c41 = arith.constant 41 : index
    %c0_3 = arith.constant 0 : index
    %4 = vector.load %arg8[%c41, %c0_3] : memref<176x16xf32, #tpu.memory_space<vmem>>, vector<8x16xf32>
    tpu.vector_store %arg8[%c41, %c0_3], %2 {strides = array<i32>} : memref<176x16xf32, #tpu.memory_space<vmem>>, vector<8x16xf32>,
    %c57 = arith.constant 57 : index
    %c0_4 = arith.constant 0 : index
    %5 = vector.load %arg8[%c57, %c0_4] : memref<176x16xf32, #tpu.memory_space<vmem>>, vector<8x16xf32>
    tpu.vector_store %arg8[%c57, %c0_4], %2 {strides = array<i32>} : memref<176x16xf32, #tpu.memory_space<vmem>>, vector<8x16xf32>,
    %c73 = arith.constant 73 : index
    %c0_5 = arith.constant 0 : index
    %6 = vector.load %arg8[%c73, %c0_5] : memref<176x16xf32, #tpu.memory_space<vmem>>, vector<8x16xf32>
    tpu.vector_store %arg8[%c73, %c0_5], %2 {strides = array<i32>} : memref<176x16xf32, #tpu.memory_space<vmem>>, vector<8x16xf32>,
    %c89 = arith.constant 89 : index
    %c0_6 = arith.constant 0 : index
    %7 = vector.load %arg8[%c89, %c0_6] : memref<176x16xf32, #tpu.memory_space<vmem>>, vector<8x16xf32>
    tpu.vector_store %arg8[%c89, %c0_6], %2 {strides = array<i32>} : memref<176x16xf32, #tpu.memory_space<vmem>>, vector<8x16xf32>,
    %c105 = arith.constant 105 : index
    %c0_7 = arith.constant 0 : index
    %8 = vector.load %arg8[%c105, %c0_7] : memref<176x16xf32, #tpu.memory_space<vmem>>, vector<8x16xf32>
    tpu.vector_store %arg8[%c105, %c0_7], %2 {strides = array<i32>} : memref<176x16xf32, #tpu.memory_space<vmem>>, vector<8x16xf32>,
    %c121 = arith.constant 121 : index
    %c0_8 = arith.constant 0 : index
    %9 = vector.load %arg8[%c121, %c0_8] : memref<176x16xf32, #tpu.memory_space<vmem>>, vector<8x16xf32>
    tpu.vector_store %arg8[%c121, %c0_8], %2 {strides = array<i32>} : memref<176x16xf32, #tpu.memory_space<vmem>>, vector<8x16xf32>,
    %cst_9 = arith.constant 0.000000e+00 : f32
    %10 = vector.broadcast %cst_9 : f32 to vector<39x16xf32>
    %c137 = arith.constant 137 : index
    %c0_10 = arith.constant 0 : index
    %11 = vector.load %arg8[%c137, %c0_10] : memref<176x16xf32, #tpu.memory_space<vmem>>, vector<39x16xf32>
    tpu.vector_store %arg8[%c137, %c0_10], %10 {strides = array<i32>} : memref<176x16xf32, #tpu.memory_space<vmem>>, vector<39x16xf32>,
    %c0_11 = arith.constant 0 : index
    %c0_12 = arith.constant 0 : index
    %c0_13 = arith.constant 0 : index
    %12 = vector.load %arg1[%c0_11, %c0_12, %c0_13] : memref<1x64x32xf32, #tpu.memory_space<vmem>>, vector<1x64x32xf32>
    %13 = vector.shape_cast %12 : vector<1x64x32xf32> to vector<64x32xf32>
    %c0_14 = arith.constant 0 : index
    %c0_15 = arith.constant 0 : index
    %14 = vector.load %arg2[%c0_14, %c0_15] : memref<32x16xf32, #tpu.memory_space<vmem>>, vector<32x16xf32>
    %cst_16 = arith.constant dense<0.000000e+00> : vector<64x16xf32>
    %15 = tpu.matmul %13, %14, %cst_16 {dimension_numbers = #tpu.dot_dimension_numbers<[1], [0], [0], [1], [0, 0, 1, 1], [], []>} : vector<64x32xf32>, vector<32x16xf32>, vector<64x16xf32> -> vector<64x16xf32>
    %c0_17 = arith.constant 0 : index
    %c0_18 = arith.constant 0 : index
    %16 = vector.load %arg3[%c0_17, %c0_18] : memref<1x16xf32, #tpu.memory_space<vmem>>, vector<1x16xf32>
    %17 = vector.broadcast %16 : vector<1x16xf32> to vector<64x16xf32>
    %18 = arith.addf %15, %17 : vector<64x16xf32>
    %cst_19 = arith.constant 0.000000e+00 : f32
    %19 = vector.broadcast %cst_19 : f32 to vector<64x16xf32>
    %20 = arith.maximumf %18, %19 : vector<64x16xf32>
    %21 = vector.extract_strided_slice %20 {offsets = [0, 0], sizes = [8, 16], strides = [1, 1]} : vector<64x16xf32> to vector<8x16xf32>
    %c17 = arith.constant 17 : index
    %c0_20 = arith.constant 0 : index
    %22 = vector.load %arg8[%c17, %c0_20] : memref<176x16xf32, #tpu.memory_space<vmem>>, vector<8x16xf32>
    tpu.vector_store %arg8[%c17, %c0_20], %21 {strides = array<i32>} : memref<176x16xf32, #tpu.memory_space<vmem>>, vector<8x16xf32>,
    %23 = vector.extract_strided_slice %20 {offsets = [8, 0], sizes = [8, 16], strides = [1, 1]} : vector<64x16xf32> to vector<8x16xf32>
    %c33 = arith.constant 33 : index
    %c0_21 = arith.constant 0 : index
    %24 = vector.load %arg8[%c33, %c0_21] : memref<176x16xf32, #tpu.memory_space<vmem>>, vector<8x16xf32>
    tpu.vector_store %arg8[%c33, %c0_21], %23 {strides = array<i32>} : memref<176x16xf32, #tpu.memory_space<vmem>>, vector<8x16xf32>,
    %25 = vector.extract_strided_slice %20 {offsets = [16, 0], sizes = [8, 16], strides = [1, 1]} : vector<64x16xf32> to vector<8x16xf32>
    %c49 = arith.constant 49 : index
    %c0_22 = arith.constant 0 : index
    %26 = vector.load %arg8[%c49, %c0_22] : memref<176x16xf32, #tpu.memory_space<vmem>>, vector<8x16xf32>
    tpu.vector_store %arg8[%c49, %c0_22], %25 {strides = array<i32>} : memref<176x16xf32, #tpu.memory_space<vmem>>, vector<8x16xf32>,
    %27 = vector.extract_strided_slice %20 {offsets = [24, 0], sizes = [8, 16], strides = [1, 1]} : vector<64x16xf32> to vector<8x16xf32>
    %c65 = arith.constant 65 : index
    %c0_23 = arith.constant 0 : index
    %28 = vector.load %arg8[%c65, %c0_23] : memref<176x16xf32, #tpu.memory_space<vmem>>, vector<8x16xf32>
    tpu.vector_store %arg8[%c65, %c0_23], %27 {strides = array<i32>} : memref<176x16xf32, #tpu.memory_space<vmem>>, vector<8x16xf32>,
    %29 = vector.extract_strided_slice %20 {offsets = [32, 0], sizes = [8, 16], strides = [1, 1]} : vector<64x16xf32> to vector<8x16xf32>
    %c81 = arith.constant 81 : index
    %c0_24 = arith.constant 0 : index
    %30 = vector.load %arg8[%c81, %c0_24] : memref<176x16xf32, #tpu.memory_space<vmem>>, vector<8x16xf32>
    tpu.vector_store %arg8[%c81, %c0_24], %29 {strides = array<i32>} : memref<176x16xf32, #tpu.memory_space<vmem>>, vector<8x16xf32>,
    %31 = vector.extract_strided_slice %20 {offsets = [40, 0], sizes = [8, 16], strides = [1, 1]} : vector<64x16xf32> to vector<8x16xf32>
    %c97 = arith.constant 97 : index
    %c0_25 = arith.constant 0 : index
    %32 = vector.load %arg8[%c97, %c0_25] : memref<176x16xf32, #tpu.memory_space<vmem>>, vector<8x16xf32>
    tpu.vector_store %arg8[%c97, %c0_25], %31 {strides = array<i32>} : memref<176x16xf32, #tpu.memory_space<vmem>>, vector<8x16xf32>,
    %33 = vector.extract_strided_slice %20 {offsets = [48, 0], sizes = [8, 16], strides = [1, 1]} : vector<64x16xf32> to vector<8x16xf32>
    %c113 = arith.constant 113 : index
    %c0_26 = arith.constant 0 : index
    %34 = vector.load %arg8[%c113, %c0_26] : memref<176x16xf32, #tpu.memory_space<vmem>>, vector<8x16xf32>
    tpu.vector_store %arg8[%c113, %c0_26], %33 {strides = array<i32>} : memref<176x16xf32, #tpu.memory_space<vmem>>, vector<8x16xf32>,
    %35 = vector.extract_strided_slice %20 {offsets = [56, 0], sizes = [8, 16], strides = [1, 1]} : vector<64x16xf32> to vector<8x16xf32>
    %c129 = arith.constant 129 : index
    %c0_27 = arith.constant 0 : index
    %36 = vector.load %arg8[%c129, %c0_27] : memref<176x16xf32, #tpu.memory_space<vmem>>, vector<8x16xf32>
    tpu.vector_store %arg8[%c129, %c0_27], %35 {strides = array<i32>} : memref<176x16xf32, #tpu.memory_space<vmem>>, vector<8x16xf32>,
    %c0_28 = arith.constant 0 : index
    %c0_29 = arith.constant 0 : index
    %37 = vector.load %arg8[%c0_28, %c0_29] : memref<176x16xf32, #tpu.memory_space<vmem>>, vector<128x16xf32>
    %c0_30 = arith.constant 0 : index
    %c0_31 = arith.constant 0 : index
    %c0_32 = arith.constant 0 : index
    %c0_33 = arith.constant 0 : index
    %38 = vector.load %arg4[%c0_30, %c0_31, %c0_32, %c0_33] : memref<3x3x16x16xf32, #tpu.memory_space<vmem>>, vector<1x1x16x16xf32>
    %39 = vector.shape_cast %38 : vector<1x1x16x16xf32> to vector<16x16xf32>
    %cst_34 = arith.constant dense<0.000000e+00> : vector<128x16xf32>
    %40 = tpu.matmul %37, %39, %cst_34 {dimension_numbers = #tpu.dot_dimension_numbers<[1], [0], [0], [1], [0, 0, 1, 1], [], []>} : vector<128x16xf32>, vector<16x16xf32>, vector<128x16xf32> -> vector<128x16xf32>
    %c1 = arith.constant 1 : index
    %c0_35 = arith.constant 0 : index
    %41 = vector.load %arg8[%c1, %c0_35] : memref<176x16xf32, #tpu.memory_space<vmem>>, vector<128x16xf32>
    %c0_36 = arith.constant 0 : index
    %c1_37 = arith.constant 1 : index
    %c0_38 = arith.constant 0 : index
    %c0_39 = arith.constant 0 : index
    %42 = vector.load %arg4[%c0_36, %c1_37, %c0_38, %c0_39] : memref<3x3x16x16xf32, #tpu.memory_space<vmem>>, vector<1x1x16x16xf32>
    %43 = vector.shape_cast %42 : vector<1x1x16x16xf32> to vector<16x16xf32>
    %cst_40 = arith.constant dense<0.000000e+00> : vector<128x16xf32>
    %44 = tpu.matmul %41, %43, %cst_40 {dimension_numbers = #tpu.dot_dimension_numbers<[1], [0], [0], [1], [0, 0, 1, 1], [], []>} : vector<128x16xf32>, vector<16x16xf32>, vector<128x16xf32> -> vector<128x16xf32>
    %45 = arith.addf %40, %44 : vector<128x16xf32>
    %c2 = arith.constant 2 : index
    %c0_41 = arith.constant 0 : index
    %46 = vector.load %arg8[%c2, %c0_41] : memref<176x16xf32, #tpu.memory_space<vmem>>, vector<128x16xf32>
    %c0_42 = arith.constant 0 : index
    %c2_43 = arith.constant 2 : index
    %c0_44 = arith.constant 0 : index
    %c0_45 = arith.constant 0 : index
    %47 = vector.load %arg4[%c0_42, %c2_43, %c0_44, %c0_45] : memref<3x3x16x16xf32, #tpu.memory_space<vmem>>, vector<1x1x16x16xf32>
    %48 = vector.shape_cast %47 : vector<1x1x16x16xf32> to vector<16x16xf32>
    %cst_46 = arith.constant dense<0.000000e+00> : vector<128x16xf32>
    %49 = tpu.matmul %46, %48, %cst_46 {dimension_numbers = #tpu.dot_dimension_numbers<[1], [0], [0], [1], [0, 0, 1, 1], [], []>} : vector<128x16xf32>, vector<16x16xf32>, vector<128x16xf32> -> vector<128x16xf32>
    %50 = arith.addf %45, %49 : vector<128x16xf32>
    %c16 = arith.constant 16 : index
    %c0_47 = arith.constant 0 : index
    %51 = vector.load %arg8[%c16, %c0_47] : memref<176x16xf32, #tpu.memory_space<vmem>>, vector<128x16xf32>
    %c1_48 = arith.constant 1 : index
    %c0_49 = arith.constant 0 : index
    %c0_50 = arith.constant 0 : index
    %c0_51 = arith.constant 0 : index
    %52 = vector.load %arg4[%c1_48, %c0_49, %c0_50, %c0_51] : memref<3x3x16x16xf32, #tpu.memory_space<vmem>>, vector<1x1x16x16xf32>
    %53 = vector.shape_cast %52 : vector<1x1x16x16xf32> to vector<16x16xf32>
    %cst_52 = arith.constant dense<0.000000e+00> : vector<128x16xf32>
    %54 = tpu.matmul %51, %53, %cst_52 {dimension_numbers = #tpu.dot_dimension_numbers<[1], [0], [0], [1], [0, 0, 1, 1], [], []>} : vector<128x16xf32>, vector<16x16xf32>, vector<128x16xf32> -> vector<128x16xf32>
    %55 = arith.addf %50, %54 : vector<128x16xf32>
    %c17_53 = arith.constant 17 : index
    %c0_54 = arith.constant 0 : index
    %56 = vector.load %arg8[%c17_53, %c0_54] : memref<176x16xf32, #tpu.memory_space<vmem>>, vector<128x16xf32>
    %c1_55 = arith.constant 1 : index
    %c1_56 = arith.constant 1 : index
    %c0_57 = arith.constant 0 : index
    %c0_58 = arith.constant 0 : index
    %57 = vector.load %arg4[%c1_55, %c1_56, %c0_57, %c0_58] : memref<3x3x16x16xf32, #tpu.memory_space<vmem>>, vector<1x1x16x16xf32>
    %58 = vector.shape_cast %57 : vector<1x1x16x16xf32> to vector<16x16xf32>
    %cst_59 = arith.constant dense<0.000000e+00> : vector<128x16xf32>
    %59 = tpu.matmul %56, %58, %cst_59 {dimension_numbers = #tpu.dot_dimension_numbers<[1], [0], [0], [1], [0, 0, 1, 1], [], []>} : vector<128x16xf32>, vector<16x16xf32>, vector<128x16xf32> -> vector<128x16xf32>
    %60 = arith.addf %55, %59 : vector<128x16xf32>
    %c18 = arith.constant 18 : index
    %c0_60 = arith.constant 0 : index
    %61 = vector.load %arg8[%c18, %c0_60] : memref<176x16xf32, #tpu.memory_space<vmem>>, vector<128x16xf32>
    %c1_61 = arith.constant 1 : index
    %c2_62 = arith.constant 2 : index
    %c0_63 = arith.constant 0 : index
    %c0_64 = arith.constant 0 : index
    %62 = vector.load %arg4[%c1_61, %c2_62, %c0_63, %c0_64] : memref<3x3x16x16xf32, #tpu.memory_space<vmem>>, vector<1x1x16x16xf32>
    %63 = vector.shape_cast %62 : vector<1x1x16x16xf32> to vector<16x16xf32>
    %cst_65 = arith.constant dense<0.000000e+00> : vector<128x16xf32>
    %64 = tpu.matmul %61, %63, %cst_65 {dimension_numbers = #tpu.dot_dimension_numbers<[1], [0], [0], [1], [0, 0, 1, 1], [], []>} : vector<128x16xf32>, vector<16x16xf32>, vector<128x16xf32> -> vector<128x16xf32>
    %65 = arith.addf %60, %64 : vector<128x16xf32>
    %c32 = arith.constant 32 : index
    %c0_66 = arith.constant 0 : index
    %66 = vector.load %arg8[%c32, %c0_66] : memref<176x16xf32, #tpu.memory_space<vmem>>, vector<128x16xf32>
    %c2_67 = arith.constant 2 : index
    %c0_68 = arith.constant 0 : index
    %c0_69 = arith.constant 0 : index
    %c0_70 = arith.constant 0 : index
    %67 = vector.load %arg4[%c2_67, %c0_68, %c0_69, %c0_70] : memref<3x3x16x16xf32, #tpu.memory_space<vmem>>, vector<1x1x16x16xf32>
    %68 = vector.shape_cast %67 : vector<1x1x16x16xf32> to vector<16x16xf32>
    %cst_71 = arith.constant dense<0.000000e+00> : vector<128x16xf32>
    %69 = tpu.matmul %66, %68, %cst_71 {dimension_numbers = #tpu.dot_dimension_numbers<[1], [0], [0], [1], [0, 0, 1, 1], [], []>} : vector<128x16xf32>, vector<16x16xf32>, vector<128x16xf32> -> vector<128x16xf32>
    %70 = arith.addf %65, %69 : vector<128x16xf32>
    %c33_72 = arith.constant 33 : index
    %c0_73 = arith.constant 0 : index
    %71 = vector.load %arg8[%c33_72, %c0_73] : memref<176x16xf32, #tpu.memory_space<vmem>>, vector<128x16xf32>
    %c2_74 = arith.constant 2 : index
    %c1_75 = arith.constant 1 : index
    %c0_76 = arith.constant 0 : index
    %c0_77 = arith.constant 0 : index
    %72 = vector.load %arg4[%c2_74, %c1_75, %c0_76, %c0_77] : memref<3x3x16x16xf32, #tpu.memory_space<vmem>>, vector<1x1x16x16xf32>
    %73 = vector.shape_cast %72 : vector<1x1x16x16xf32> to vector<16x16xf32>
    %cst_78 = arith.constant dense<0.000000e+00> : vector<128x16xf32>
    %74 = tpu.matmul %71, %73, %cst_78 {dimension_numbers = #tpu.dot_dimension_numbers<[1], [0], [0], [1], [0, 0, 1, 1], [], []>} : vector<128x16xf32>, vector<16x16xf32>, vector<128x16xf32> -> vector<128x16xf32>
    %75 = arith.addf %70, %74 : vector<128x16xf32>
    %c34 = arith.constant 34 : index
    %c0_79 = arith.constant 0 : index
    %76 = vector.load %arg8[%c34, %c0_79] : memref<176x16xf32, #tpu.memory_space<vmem>>, vector<128x16xf32>
    %c2_80 = arith.constant 2 : index
    %c2_81 = arith.constant 2 : index
    %c0_82 = arith.constant 0 : index
    %c0_83 = arith.constant 0 : index
    %77 = vector.load %arg4[%c2_80, %c2_81, %c0_82, %c0_83] : memref<3x3x16x16xf32, #tpu.memory_space<vmem>>, vector<1x1x16x16xf32>
    %78 = vector.shape_cast %77 : vector<1x1x16x16xf32> to vector<16x16xf32>
    %cst_84 = arith.constant dense<0.000000e+00> : vector<128x16xf32>
    %79 = tpu.matmul %76, %78, %cst_84 {dimension_numbers = #tpu.dot_dimension_numbers<[1], [0], [0], [1], [0, 0, 1, 1], [], []>} : vector<128x16xf32>, vector<16x16xf32>, vector<128x16xf32> -> vector<128x16xf32>
    %80 = arith.addf %75, %79 : vector<128x16xf32>
    %c0_85 = arith.constant 0 : index
    %c0_86 = arith.constant 0 : index
    %81 = vector.load %arg5[%c0_85, %c0_86] : memref<1x16xf32, #tpu.memory_space<vmem>>, vector<1x16xf32>
    %82 = vector.broadcast %81 : vector<1x16xf32> to vector<128x16xf32>
    %83 = arith.addf %80, %82 : vector<128x16xf32>
    %cst_87 = arith.constant 0.000000e+00 : f32
    %84 = vector.broadcast %cst_87 : f32 to vector<128x16xf32>
    %85 = arith.maximumf %83, %84 : vector<128x16xf32>
    %c0_88 = arith.constant 0 : index
    %c0_89 = arith.constant 0 : index
    %86 = vector.load %arg6[%c0_88, %c0_89] : memref<16x8xf32, #tpu.memory_space<vmem>>, vector<16x8xf32>
    %cst_90 = arith.constant dense<0.000000e+00> : vector<128x8xf32>
    %87 = tpu.matmul %85, %86, %cst_90 {dimension_numbers = #tpu.dot_dimension_numbers<[1], [0], [0], [1], [0, 0, 1, 1], [], []>} : vector<128x16xf32>, vector<16x8xf32>, vector<128x8xf32> -> vector<128x8xf32>
    %88 = vector.shape_cast %87 : vector<128x8xf32> to vector<8x16x8xf32>
    %c0_91 = arith.constant 0 : index
    %c0_92 = arith.constant 0 : index
    %c0_93 = arith.constant 0 : index
    %c0_94 = arith.constant 0 : index
    %89 = vector.load %arg7[%c0_91, %c0_92, %c0_93, %c0_94] : memref<1x8x16x8xf32, #tpu.memory_space<vmem>>, vector<1x8x16x8xf32>
    %90 = vector.shape_cast %89 : vector<1x8x16x8xf32> to vector<8x16x8xf32>
    %91 = vector.shape_cast %88 : vector<8x16x8xf32> to vector<1x8x16x8xf32>
    tpu.vector_store %arg7[%c0_91, %c0_92, %c0_93, %c0_94], %91 {strides = array<i32>} : memref<1x8x16x8xf32, #tpu.memory_space<vmem>>, vector<1x8x16x8xf32>,
    return
  }
  func.func @transform_0(%arg0: i32) -> (i32, i32, i32) {
    %c0_i32 = arith.constant 0 : i32
    %c0_i32_0 = arith.constant 0 : i32
    %c0_i32_1 = arith.constant 0 : i32
    return %arg0, %c0_i32, %c0_i32_0 : i32, i32, i32
  }
  func.func @transform_1(%arg0: i32) -> (i32, i32) {
    %c0_i32 = arith.constant 0 : i32
    %c0_i32_0 = arith.constant 0 : i32
    %c0_i32_1 = arith.constant 0 : i32
    return %c0_i32, %c0_i32_0 : i32, i32
  }
  func.func @transform_2(%arg0: i32) -> (i32, i32) {
    %c0_i32 = arith.constant 0 : i32
    %c0_i32_0 = arith.constant 0 : i32
    %c0_i32_1 = arith.constant 0 : i32
    return %c0_i32, %c0_i32_0 : i32, i32
  }
  func.func @transform_3(%arg0: i32) -> (i32, i32, i32, i32) {
    %c0_i32 = arith.constant 0 : i32
    %c0_i32_0 = arith.constant 0 : i32
    %c0_i32_1 = arith.constant 0 : i32
    %c0_i32_2 = arith.constant 0 : i32
    %c0_i32_3 = arith.constant 0 : i32
    return %c0_i32, %c0_i32_0, %c0_i32_1, %c0_i32_2 : i32, i32, i32, i32
  }
  func.func @transform_4(%arg0: i32) -> (i32, i32) {
    %c0_i32 = arith.constant 0 : i32
    %c0_i32_0 = arith.constant 0 : i32
    %c0_i32_1 = arith.constant 0 : i32
    return %c0_i32, %c0_i32_0 : i32, i32
  }
  func.func @transform_5(%arg0: i32) -> (i32, i32) {
    %c0_i32 = arith.constant 0 : i32
    %c0_i32_0 = arith.constant 0 : i32
    %c0_i32_1 = arith.constant 0 : i32
    return %c0_i32, %c0_i32_0 : i32, i32
  }
  func.func @transform_6(%arg0: i32) -> (i32, i32, i32, i32) {
    %c0_i32 = arith.constant 0 : i32
    %c0_i32_0 = arith.constant 0 : i32
    %c0_i32_1 = arith.constant 0 : i32
    %c0_i32_2 = arith.constant 0 : i32
    return %arg0, %c0_i32, %c0_i32_0, %c0_i32_1 : i32, i32, i32, i32
  }
}

</mosaic_0001>

<llo_original>
// kernel: tpu_custom_call.1
$region0: #{tpu_custom_call.1}
  #allocation0 [shape = 'u32[]', space=smem, size = 0x4, offset = 0x4, fixed_abs, tag = 'smem constant byte address 0x4 - core index']
  #allocation1 [shape = 'u32[144,128]{1,0:T(1,128)}', space=vmem, size = 0x12000, scoped, tag = 'internal scratch']
  #allocation2 [shape = 'f32[176,16]{1,0:T(8,128)}', space=vmem, size = 0x16000, scoped, tag = 'scratch operand']
  %s0 = inlined_call_operand.vmem [shape: f32[2,64,32], index: 0, kind: input, shape index: {}]
  %s1 = inlined_call_operand.vmem [shape: f32[32,16], index: 1, kind: input, shape index: {}]
  %s2 = inlined_call_operand.vmem [shape: f32[1,16], index: 2, kind: input, shape index: {}]
  %s3 = inlined_call_operand.vmem [shape: f32[3,3,16,16], index: 3, kind: input, shape index: {}]
  %s4 = inlined_call_operand.vmem [shape: f32[1,16], index: 4, kind: input, shape index: {}]
  %s5 = inlined_call_operand.vmem [shape: f32[16,8], index: 5, kind: input, shape index: {}]
  %s6 = inlined_call_operand.vmem [shape: f32[2,8,16,8], index: 6, kind: output, shape index: {}]
  %s7 = sld [smem:[#allocation0]]
  $region57: #{tpu_custom_call.1} parent=0
    _
  %s9 = ssub.s32 1, %s7
  %s10 = scalar_select 0, %s9, %s7
  loop: start=0, step=1, limit=4
  $region2: #{tpu_custom_call.1} parent=0 // loop_pre_header
    _
  $region3: #{tpu_custom_call.1} parent=0 // loop_header
    %s12 = sphi 0, %s16
    %p13 = scmp.ge.s32.totalorder %s12, 4
    %s22 = sphi 0, %s24
    %s25 = sphi 0, %s22
    %s26 = sphi 0, %s25
    %s42 = sphi 0, %s26
    %s46 = sphi 0, %s46
    %s48 = sphi 0, %s46
    %s49 = sphi 0, %s48
    %s63 = sphi 0, %s49
    %s67 = sphi 0, %s67
    %s69 = sphi 0, %s67
    %s70 = sphi 0, %s69
    %s84 = sphi 0, %s70
    %s88 = sphi 0, %s88
    %s90 = sphi 0, %s88
    %s91 = sphi 0, %s90
    %s105 = sphi 0, %s91
    %s109 = sphi 0, %s109
    %s111 = sphi 0, %s109
    %s112 = sphi 0, %s111
    %s126 = sphi 0, %s112
    %s130 = sphi 0, %s130
    %s132 = sphi 0, %s130
    %s133 = sphi 0, %s132
    %s147 = sphi 0, %s133
    %s153 = sphi 0, %s155
    %s156 = sphi 0, %s153
    %s157 = sphi 0, %s156
    %s173 = sphi 0, %s157
  $region4: #{tpu_custom_call.1} parent=0 // loop_header_branch
    %15 = sbr.rel (%p13) target = $region8
  $region5: #{tpu_custom_call.1} parent=0 // loop_body
    %s17 = ssub.s32 %s12, 1
    %s18 = ssub.s32 %s12, 2
    %s19 = sadd.s32 %s12, 1
    %s20 = ssub.s32 %s12, %s19
    %p21 = scmp.eq.s32.totalorder %s20, 0
    %s23 = sadd.s32 %s22, 1
    %s24 = scalar_select %p21, %s22, %s23
    %p27 = pneg %p21
    %p28 = scmp.eq.s32.totalorder %s12, 1
    %p29 = por %p27, %p28
    %p30 = scmp.ne.s32.totalorder %s22, %s25
    %p31 = scmp.eq.s32.totalorder %s12, 0
    %p32 = por %p30, %p31
    %p33 = scmp.ne.s32.totalorder %s22, %s25
    %p34 = scmp.eq.s32.totalorder %s17, 1
    %p35 = por %p33, %p34
    %p36 = scmp.ne.s32.totalorder %s25, %s26
    %p37 = scmp.eq.s32.totalorder %s17, 0
    %p38 = por %p36, %p37
    %p39 = scmp.ne.s32.totalorder %s25, %s26
    %p40 = scmp.eq.s32.totalorder %s18, 1
    %p41 = por %p39, %p40
    %p43 = scmp.ne.s32.totalorder %s26, %s42
    %p44 = scmp.eq.s32.totalorder %s18, 0
    %p45 = por %p43, %p44
    %s47 = sadd.s32 %s46, 1
    %p50 = scmp.eq.s32.totalorder %s12, 1
    %p51 = scmp.ne.s32.totalorder %s46, %s48
    %p52 = scmp.eq.s32.totalorder %s12, 0
    %p53 = por %p51, %p52
    %p54 = scmp.ne.s32.totalorder %s46, %s48
    %p55 = scmp.eq.s32.totalorder %s17, 1
    %p56 = por %p54, %p55
    %p57 = scmp.ne.s32.totalorder %s48, %s49
    %p58 = scmp.eq.s32.totalorder %s17, 0
    %p59 = por %p57, %p58
    %p60 = scmp.ne.s32.totalorder %s48, %s49
    %p61 = scmp.eq.s32.totalorder %s18, 1
    %p62 = por %p60, %p61
    %p64 = scmp.ne.s32.totalorder %s49, %s63
    %p65 = scmp.eq.s32.totalorder %s18, 0
    %p66 = por %p64, %p65
    %s68 = sadd.s32 %s67, 1
    %p71 = scmp.eq.s32.totalorder %s12, 1
    %p72 = scmp.ne.s32.totalorder %s67, %s69
    %p73 = scmp.eq.s32.totalorder %s12, 0
    %p74 = por %p72, %p73
    %p75 = scmp.ne.s32.totalorder %s67, %s69
    %p76 = scmp.eq.s32.totalorder %s17, 1
    %p77 = por %p75, %p76
    %p78 = scmp.ne.s32.totalorder %s69, %s70
    %p79 = scmp.eq.s32.totalorder %s17, 0
    %p80 = por %p78, %p79
    %p81 = scmp.ne.s32.totalorder %s69, %s70
    %p82 = scmp.eq.s32.totalorder %s18, 1
    %p83 = por %p81, %p82
    %p85 = scmp.ne.s32.totalorder %s70, %s84
    %p86 = scmp.eq.s32.totalorder %s18, 0
    %p87 = por %p85, %p86
    %s89 = sadd.s32 %s88, 1
    %p92 = scmp.eq.s32.totalorder %s12, 1
    %p93 = scmp.ne.s32.totalorder %s88, %s90
    %p94 = scmp.eq.s32.totalorder %s12, 0
    %p95 = por %p93, %p94
    %p96 = scmp.ne.s32.totalorder %s88, %s90
    %p97 = scmp.eq.s32.totalorder %s17, 1
    %p98 = por %p96, %p97
    %p99 = scmp.ne.s32.totalorder %s90, %s91
    %p100 = scmp.eq.s32.totalorder %s17, 0
    %p101 = por %p99, %p100
    %p102 = scmp.ne.s32.totalorder %s90, %s91
    %p103 = scmp.eq.s32.totalorder %s18, 1
    %p104 = por %p102, %p103
    %p106 = scmp.ne.s32.totalorder %s91, %s105
    %p107 = scmp.eq.s32.totalorder %s18, 0
    %p108 = por %p106, %p107
    %s110 = sadd.s32 %s109, 1
    %p113 = scmp.eq.s32.totalorder %s12, 1
    %p114 = scmp.ne.s32.totalorder %s109, %s111
    %p115 = scmp.eq.s32.totalorder %s12, 0
    %p116 = por %p114, %p115
    %p117 = scmp.ne.s32.totalorder %s109, %s111
    %p118 = scmp.eq.s32.totalorder %s17, 1
    %p119 = por %p117, %p118
    %p120 = scmp.ne.s32.totalorder %s111, %s112
    %p121 = scmp.eq.s32.totalorder %s17, 0
    %p122 = por %p120, %p121
    %p123 = scmp.ne.s32.totalorder %s111, %s112
    %p124 = scmp.eq.s32.totalorder %s18, 1
    %p125 = por %p123, %p124
    %p127 = scmp.ne.s32.totalorder %s112, %s126
    %p128 = scmp.eq.s32.totalorder %s18, 0
    %p129 = por %p127, %p128
    %s131 = sadd.s32 %s130, 1
    %p134 = scmp.eq.s32.totalorder %s12, 1
    %p135 = scmp.ne.s32.totalorder %s130, %s132
    %p136 = scmp.eq.s32.totalorder %s12, 0
    %p137 = por %p135, %p136
    %p138 = scmp.ne.s32.totalorder %s130, %s132
    %p139 = scmp.eq.s32.totalorder %s17, 1
    %p140 = por %p138, %p139
    %p141 = scmp.ne.s32.totalorder %s132, %s133
    %p142 = scmp.eq.s32.totalorder %s17, 0
    %p143 = por %p141, %p142
    %p144 = scmp.ne.s32.totalorder %s132, %s133
    %p145 = scmp.eq.s32.totalorder %s18, 1
    %p146 = por %p144, %p145
    %p148 = scmp.ne.s32.totalorder %s133, %s147
    %p149 = scmp.eq.s32.totalorder %s18, 0
    %p150 = por %p148, %p149
    %s151 = ssub.s32 %s12, %s19
    %p152 = scmp.eq.s32.totalorder %s151, 0
    %s154 = sadd.s32 %s153, 1
    %s155 = scalar_select %p152, %s153, %s154
    %p158 = pneg %p152
    %p159 = scmp.eq.s32.totalorder %s12, 1
    %p160 = por %p158, %p159
    %p161 = scmp.ne.s32.totalorder %s153, %s156
    %p162 = scmp.eq.s32.totalorder %s12, 0
    %p163 = por %p161, %p162
    %p164 = scmp.ne.s32.totalorder %s153, %s156
    %p165 = scmp.eq.s32.totalorder %s17, 1
    %p166 = por %p164, %p165
    %p167 = scmp.ne.s32.totalorder %s156, %s157
    %p168 = scmp.eq.s32.totalorder %s17, 0
    %p169 = por %p167, %p168
    %p170 = scmp.ne.s32.totalorder %s156, %s157
    %p171 = scmp.eq.s32.totalorder %s18, 1
    %p172 = por %p170, %p171
    %p174 = scmp.ne.s32.totalorder %s157, %s173
    %p175 = scmp.eq.s32.totalorder %s18, 0
    %p176 = por %p174, %p175
    %p177 = scmp.le.s32.totalorder 1, %s12
    %p178 = scmp.lt.s32.totalorder %s12, 3
    %p179 = pnand %p177, %p178
    %p180 = pneg %p179
    // Predicated region
    $region9: #{tpu_custom_call.1} parent=5 // pred_check
      _
    $region10: #{tpu_custom_call.1} parent=5 // pred_check_branch
      %182 = sbr.rel (%p179) target = $region12
    $region11: #{tpu_custom_call.1} parent=5 // pred_region
      %s183 = ssub.s32 %s12, 1
      // Predicated region
      $region13: #{tpu_custom_call.1} parent=11 // pred_check
        %p184 = pneg %p59
      $region14: #{tpu_custom_call.1} parent=11 // pred_check_branch
        %186 = sbr.rel (%p184) target = $region16
      $region15: #{tpu_custom_call.1} parent=11 // pred_region
        _
      $region16: #{tpu_custom_call.1} parent=11 // pred_fallthru
        _
      // Predicated region
      $region17: #{tpu_custom_call.1} parent=11 // pred_check
        %p187 = pneg %p80
      $region18: #{tpu_custom_call.1} parent=11 // pred_check_branch
        %189 = sbr.rel (%p187) target = $region20
      $region19: #{tpu_custom_call.1} parent=11 // pred_region
        _
      $region20: #{tpu_custom_call.1} parent=11 // pred_fallthru
        _
      // Predicated region
      $region21: #{tpu_custom_call.1} parent=11 // pred_check
        %p190 = pneg %p101
      $region22: #{tpu_custom_call.1} parent=11 // pred_check_branch
        %192 = sbr.rel (%p190) target = $region24
      $region23: #{tpu_custom_call.1} parent=11 // pred_region
        _
      $region24: #{tpu_custom_call.1} parent=11 // pred_fallthru
        _
      // Predicated region
      $region25: #{tpu_custom_call.1} parent=11 // pred_check
        %p193 = pneg %p122
      $region26: #{tpu_custom_call.1} parent=11 // pred_check_branch
        %195 = sbr.rel (%p193) target = $region28
      $region27: #{tpu_custom_call.1} parent=11 // pred_region
        _
      $region28: #{tpu_custom_call.1} parent=11 // pred_fallthru
        _
      // Predicated region
      $region29: #{tpu_custom_call.1} parent=11 // pred_check
        %p196 = pneg %p143
      $region30: #{tpu_custom_call.1} parent=11 // pred_check_branch
        %198 = sbr.rel (%p196) target = $region32
      $region31: #{tpu_custom_call.1} parent=11 // pred_region
        _
      $region32: #{tpu_custom_call.1} parent=11 // pred_fallthru
        _
    $region12: #{tpu_custom_call.1} parent=5 // pred_fallthru
      _
    %p199 = scmp.lt.s32.totalorder %s12, 2
    // Predicated region
    $region33: #{tpu_custom_call.1} parent=5 // pred_check
      %p200 = pneg %p199
    $region34: #{tpu_custom_call.1} parent=5 // pred_check_branch
      %202 = sbr.rel (%p200) target = $region36
    $region35: #{tpu_custom_call.1} parent=5 // pred_region
      // Predicated region
      $region37: #{tpu_custom_call.1} parent=35 // pred_check
        %p203 = pneg %p32
      $region38: #{tpu_custom_call.1} parent=35 // pred_check_branch
        %205 = sbr.rel (%p203) target = $region40
      $region39: #{tpu_custom_call.1} parent=35 // pred_region
        %p206 = scmp.lt.s32.totalorder %s12, 1
        %s207 = scalar_select %p206, %s12, 1
        %s208 = smul.addr %s207, 8
        %s209 = smul.addr %s208, 8
        %s210 = scalar_lea.vmem %s0, %s209
      $region40: #{tpu_custom_call.1} parent=35 // pred_fallthru
        _
    $region36: #{tpu_custom_call.1} parent=5 // pred_fallthru
      _
    %p211 = scmp.le.s32.totalorder 1, %s12
    %p212 = scmp.lt.s32.totalorder %s12, 3
    %p213 = pnand %p211, %p212
    %p214 = pneg %p213
    // Predicated region
    $region41: #{tpu_custom_call.1} parent=5 // pred_check
      _
    $region42: #{tpu_custom_call.1} parent=5 // pred_check_branch
      %216 = sbr.rel (%p213) target = $region44
    $region43: #{tpu_custom_call.1} parent=5 // pred_region
      %s217 = ssub.s32 %s12, 1
      %p218 = scmp.lt.s32.totalorder %s17, 1
      %s219 = scalar_select %p218, %s17, 1
      %s220 = smul.addr %s219, 8
      %s221 = smul.addr %s220, 8
      %s222 = scalar_lea.vmem %s0, %s221
      %p223 = pneg %p38
      %p224 = pneg %p35
      %p225 = pneg %p59
      %p226 = pneg %p56
      %p227 = pneg %p80
      %p228 = pneg %p77
      %p229 = pneg %p101
      %p230 = pneg %p98
      %p231 = pneg %p122
      %p232 = pneg %p119
      %p233 = pneg %p143
      %p234 = pneg %p140
      %p235 = pneg %p169
      %p236 = pneg %p166
      %p237 = scmp.lt.s32.totalorder %s17, 1
      %s238 = scalar_select %p237, %s17, 1
      %s239 = smul.addr %s238, 16
      %s240 = smul.addr %s239, 8
      %s241 = scalar_lea.vmem %s6, %s240
      %p242 = scmp.lt.s32.totalorder %s17, 1
      %s243 = scalar_select %p242, %s17, 1
      %s244 = smul.addr %s243, 8
      %s245 = smul.addr %s244, 8
      %s246 = scalar_lea.vmem %s0, %s245
      %p247 = scmp.lt.s32.totalorder %s17, 1
      %s248 = scalar_select %p247, %s17, 1
      %s249 = smul.addr %s248, 16
      %s250 = smul.addr %s249, 8
      %s251 = scalar_lea.vmem %s6, %s250
      %vm252 = vcmask 130048
      %253 = vst.msk [vmem:[#allocation2] sm:$0xff] %vm252, 0.0
      %254 = vst.msk [vmem:[#allocation2 + $0x8] sm:$0xff] %vm252, 0.0
      %vm255 = vcmask 122880
      %256 = vst.msk [vmem:[#allocation2 + $0x10] sm:$0x1] %vm255, 0.0
      %257 = vst.msk [vmem:[#allocation2 + $0x19] sm:$0xff] %vm252, 0.0
      %258 = vst.msk [vmem:[#allocation2 + $0x29] sm:$0xff] %vm252, 0.0
      %259 = vst.msk [vmem:[#allocation2 + $0x39] sm:$0xff] %vm252, 0.0
      %260 = vst.msk [vmem:[#allocation2 + $0x49] sm:$0xff] %vm252, 0.0
      %261 = vst.msk [vmem:[#allocation2 + $0x59] sm:$0xff] %vm252, 0.0
      %262 = vst.msk [vmem:[#allocation2 + $0x69] sm:$0xff] %vm252, 0.0
      %263 = vst.msk [vmem:[#allocation2 + $0x79] sm:$0xff] %vm252, 0.0
      %264 = vst.msk [vmem:[#allocation2 + $0x89] sm:$0xff] %vm252, 0.0
      %265 = vst.msk [vmem:[#allocation2 + $0x91] sm:$0xff] %vm252, 0.0
      %266 = vst.msk [vmem:[#allocation2 + $0x99] sm:$0xff] %vm252, 0.0
      %267 = vst.msk [vmem:[#allocation2 + $0xa1] sm:$0xff] %vm252, 0.0
      %vm268 = vcmask 129024
      %269 = vst.msk [vmem:[#allocation2 + $0xa9] sm:$0x7f] %vm268, 0.0
      %v270 = vld [vmem:[%s246] sm:$0xff]
      %v271 = vld [vmem:[%s246 + $0x8] sm:$0xff]
      %v272 = vld [vmem:[%s246 + $0x10] sm:$0xff]
      %v273 = vld [vmem:[%s246 + $0x18] sm:$0xff]
      %v274 = vld [vmem:[%s246 + $0x20] sm:$0xff]
      %v275 = vld [vmem:[%s246 + $0x28] sm:$0xff]
      %v276 = vld [vmem:[%s246 + $0x30] sm:$0xff]
      %v277 = vld [vmem:[%s246 + $0x38] sm:$0xff]
      %v278 = vld [vmem:[%s1] sm:$0xff]
      %v279 = vld [vmem:[%s1 + $0x8] sm:$0xff]
      %v280 = vld [vmem:[%s1 + $0x10] sm:$0xff]
      %v281 = vld [vmem:[%s1 + $0x18] sm:$0xff]
      %v282 = vld [vmem:[%s2] sm:$0x1]
      %v284 = vlaneseq
      %v285 = vshrl.u32 %v284, 7
      %v286 = vsub.s32 0, %v285
      %v287 = vrot.slane %v282, %v286
      %vm289 = vcmask 261120
      %v291 = vsel %vm289, %v270, 0
      %v294 = vsel %vm289, %v271, 0
      %v297 = vsel %vm289, %v272, 0
      %v300 = vsel %vm289, %v273, 0
      %v303 = vsel %vm289, %v274, 0
      %v306 = vsel %vm289, %v275, 0
      %v309 = vsel %vm289, %v276, 0
      %v312 = vsel %vm289, %v277, 0
      %314 = vmatprep.subr.mxu0 0.0
      %315 = vmatpush1.msra.mxu0 0.0
      %316 = vmatprep.subr.mxu0 0.0
      %317 = vmatpush1.msra.mxu0 0.0
      %318 = vmatprep.subr.mxu0 0.0
      %319 = vmatpush1.msra.mxu0 0.0
      %320 = vmatprep.subr.mxu0 0.0
      %321 = vmatpush1.msra.mxu0 0.0
      %322 = vmatprep.subr.mxu0 0.0
      %323 = vmatpush1.msra.mxu0 0.0
      %324 = vmatprep.subr.mxu0 0.0
      %325 = vmatpush1.msra.mxu0 0.0
      %326 = vmatprep.subr.mxu0 0.0
      %327 = vmatpush1.msra.mxu0 0.0
      %328 = vmatprep.subr.mxu0 0.0
      %329 = vmatpush1.msra.mxu0 0.0
      %330 = vmatprep.subr.mxu0 0.0
      %331 = vmatpush1.msra.mxu0 0.0
      %332 = vmatprep.subr.mxu0 0.0
      %333 = vmatpush1.msra.mxu0 0.0
      %334 = vmatprep.subr.mxu0 0.0
      %335 = vmatpush1.msra.mxu0 0.0
      %336 = vmatprep.subr.mxu0 0.0
      %337 = vmatpush1.msra.mxu0 0.0
      %338 = vmatprep.subr.mxu0 0.0
      %339 = vmatpush1.msra.mxu0 %v281
      %340 = vmatprep.subr.mxu0 0.0
      %341 = vmatpush1.msra.mxu0 %v280
      %342 = vmatprep.subr.mxu0 0.0
      %343 = vmatpush1.msra.mxu0 %v279
      %344 = vmatprep.subr.mxu0 0.0
      %345 = vmatpush1.msra.mxu0 %v278
      %346 = vmatprep.subr.mxu0 0.0
      %347 = vmatpush2.msra.mxu0 0.0
      %348 = vmatprep.subr.mxu0 0.0
      %349 = vmatpush2.msra.mxu0 0.0
      %350 = vmatprep.subr.mxu0 0.0
      %351 = vmatpush2.msra.mxu0 0.0
      %352 = vmatprep.subr.mxu0 0.0
      %353 = vmatpush2.msra.mxu0 0.0
      %354 = vmatprep.subr.mxu0 0.0
      %355 = vmatpush2.msra.mxu0 0.0
      %356 = vmatprep.subr.mxu0 0.0
      %357 = vmatpush2.msra.mxu0 0.0
      %358 = vmatprep.subr.mxu0 0.0
      %359 = vmatpush2.msra.mxu0 0.0
      %360 = vmatprep.subr.mxu0 0.0
      %361 = vmatpush2.msra.mxu0 0.0
      %362 = vmatprep.subr.mxu0 0.0
      %363 = vmatpush2.msra.mxu0 0.0
      %364 = vmatprep.subr.mxu0 0.0
      %365 = vmatpush2.msra.mxu0 0.0
      %366 = vmatprep.subr.mxu0 0.0
      %367 = vmatpush2.msra.mxu0 0.0
      %368 = vmatprep.subr.mxu0 0.0
      %369 = vmatpush2.msra.mxu0 0.0
      %370 = vmatprep.subr.mxu0 0.0
      %371 = vmatpush2.msra.mxu0 0.0
      %372 = vmatprep.subr.mxu0 0.0
      %373 = vmatpush2.msra.mxu0 0.0
      %374 = vmatprep.subr.mxu0 0.0
      %375 = vmatpush2.msra.mxu0 0.0
      %376 = vmatprep.subr.mxu0 0.0
      %377 = vmatpush2.msra.mxu0 0.0
      %378 = vmatprep.mubr.f32.mxu0 0.0
      %379 = vmatmul.mubr.f32.gmra.mxu0 %v291
      %v380 = vpop.f32.mrf.mxu0
      %v381 = vadd.f32 %v287, %v380
      %v382 = vpop.f32.mrf.mxu0
      %383 = vmatprep.mubr.f32.mxu0 0.0
      %384 = vmatmul.mubr.f32.gmra.mxu0 %v294
      %v385 = vpop.f32.mrf.mxu0
      %v386 = vadd.f32 %v287, %v385
      %v387 = vpop.f32.mrf.mxu0
      %388 = vmatprep.mubr.f32.mxu0 0.0
      %389 = vmatmul.mubr.f32.gmra.mxu0 %v297
      %v390 = vpop.f32.mrf.mxu0
      %v391 = vadd.f32 %v287, %v390
      %v392 = vpop.f32.mrf.mxu0
      %393 = vmatprep.mubr.f32.mxu0 0.0
      %394 = vmatmul.mubr.f32.gmra.mxu0 %v300
      %v395 = vpop.f32.mrf.mxu0
      %v396 = vadd.f32 %v287, %v395
      %v397 = vpop.f32.mrf.mxu0
      %398 = vmatprep.mubr.f32.mxu0 0.0
      %399 = vmatmul.mubr.f32.gmra.mxu0 %v303
      %v400 = vpop.f32.mrf.mxu0
      %v401 = vadd.f32 %v287, %v400
      %v402 = vpop.f32.mrf.mxu0
      %403 = vmatprep.mubr.f32.mxu0 0.0
      %404 = vmatmul.mubr.f32.gmra.mxu0 %v306
      %v405 = vpop.f32.mrf.mxu0
      %v406 = vadd.f32 %v287, %v405
      %v407 = vpop.f32.mrf.mxu0
      %408 = vmatprep.mubr.f32.mxu0 0.0
      %409 = vmatmul.mubr.f32.gmra.mxu0 %v309
      %v410 = vpop.f32.mrf.mxu0
      %v411 = vadd.f32 %v287, %v410
      %v412 = vpop.f32.mrf.mxu0
      %413 = vmatprep.mubr.f32.mxu0 0.0
      %414 = vmatmul.mubr.f32.gmra.mxu0 %v312
      %v415 = vpop.f32.mrf.mxu0
      %v416 = vadd.f32 %v287, %v415
      %v417 = vpop.f32.mrf.mxu0
      %418 = vdwg.mxu0
      %v419 = vmax.f32 %v381, 0.0
      %v420 = vmax.f32 %v386, 0.0
      %v421 = vmax.f32 %v391, 0.0
      %v422 = vmax.f32 %v396, 0.0
      %v423 = vmax.f32 %v401, 0.0
      %v424 = vmax.f32 %v406, 0.0
      %v425 = vmax.f32 %v411, 0.0
      %v426 = vmax.f32 %v416, 0.0
      %427 = vst.msk [vmem:[#allocation2 + $0x11] sm:$0xff] %vm252, %v419
      %428 = vst.msk [vmem:[#allocation2 + $0x21] sm:$0xff] %vm252, %v420
      %429 = vst.msk [vmem:[#allocation2 + $0x31] sm:$0xff] %vm252, %v421
      %430 = vst.msk [vmem:[#allocation2 + $0x41] sm:$0xff] %vm252, %v422
      %431 = vst.msk [vmem:[#allocation2 + $0x51] sm:$0xff] %vm252, %v423
      %432 = vst.msk [vmem:[#allocation2 + $0x61] sm:$0xff] %vm252, %v424
      %433 = vst.msk [vmem:[#allocation2 + $0x71] sm:$0xff] %vm252, %v425
      %434 = vst.msk [vmem:[#allocation2 + $0x81] sm:$0xff] %vm252, %v426
      %v435 = vld [vmem:[#allocation2] sm:$0xff]
      %v436 = vld [vmem:[#allocation2 + $0x8] sm:$0xff]
      %v437 = vld [vmem:[#allocation2 + $0x10] sm:$0xff]
      %v438 = vld [vmem:[#allocation2 + $0x18] sm:$0xff]
      %v439 = vld [vmem:[#allocation2 + $0x20] sm:$0xff]
      %v440 = vld [vmem:[#allocation2 + $0x28] sm:$0xff]
      %v441 = vld [vmem:[#allocation2 + $0x30] sm:$0xff]
      %v442 = vld [vmem:[#allocation2 + $0x38] sm:$0xff]
      %v443 = vld [vmem:[#allocation2 + $0x40] sm:$0xff]
      %v444 = vld [vmem:[#allocation2 + $0x48] sm:$0xff]
      %v445 = vld [vmem:[#allocation2 + $0x50] sm:$0xff]
      %v446 = vld [vmem:[#allocation2 + $0x58] sm:$0xff]
      %v447 = vld [vmem:[#allocation2 + $0x60] sm:$0xff]
      %v448 = vld [vmem:[#allocation2 + $0x68] sm:$0xff]
      %v449 = vld [vmem:[#allocation2 + $0x70] sm:$0xff]
      %v450 = vld [vmem:[#allocation2 + $0x78] sm:$0xff]
      %v451 = vld [vmem:[%s3] sm:$0xff]
      %v452 = vld [vmem:[%s3 + $0x8] sm:$0xff]
      %v453 = vld [vmem:[#allocation2 + $0x1] sm:$0xff]
      %v454 = vld [vmem:[#allocation2 + $0x9] sm:$0xff]
      %v455 = vld [vmem:[#allocation2 + $0x11] sm:$0xff]
      %v456 = vld [vmem:[#allocation2 + $0x19] sm:$0xff]
      %v457 = vld [vmem:[#allocation2 + $0x21] sm:$0xff]
      %v458 = vld [vmem:[#allocation2 + $0x29] sm:$0xff]
      %v459 = vld [vmem:[#allocation2 + $0x31] sm:$0xff]
      %v460 = vld [vmem:[#allocation2 + $0x39] sm:$0xff]
      %v461 = vld [vmem:[#allocation2 + $0x41] sm:$0xff]
      %v462 = vld [vmem:[#allocation2 + $0x49] sm:$0xff]
      %v463 = vld [vmem:[#allocation2 + $0x51] sm:$0xff]
      %v464 = vld [vmem:[#allocation2 + $0x59] sm:$0xff]
      %v465 = vld [vmem:[#allocation2 + $0x61] sm:$0xff]
      %v466 = vld [vmem:[#allocation2 + $0x69] sm:$0xff]
      %v467 = vld [vmem:[#allocation2 + $0x71] sm:$0xff]
      %v468 = vld [vmem:[#allocation2 + $0x79] sm:$0xff]
      %s469 = scalar_lea.vmem %s3, 16
      %v470 = vld [vmem:[%s469] sm:$0xff]
      %v471 = vld [vmem:[%s469 + $0x8] sm:$0xff]
      %v473 = vsel %vm252, %v453, 0
      %v476 = vsel %vm252, %v454, 0
      %v479 = vsel %vm252, %v455, 0
      %v482 = vsel %vm252, %v456, 0
      %v485 = vsel %vm252, %v457, 0
      %v488 = vsel %vm252, %v458, 0
      %v491 = vsel %vm252, %v459, 0
      %v494 = vsel %vm252, %v460, 0
      %v497 = vsel %vm252, %v461, 0
      %v500 = vsel %vm252, %v462, 0
      %v503 = vsel %vm252, %v463, 0
      %v506 = vsel %vm252, %v464, 0
      %v509 = vsel %vm252, %v465, 0
      %v512 = vsel %vm252, %v466, 0
      %v515 = vsel %vm252, %v467, 0
      %v518 = vsel %vm252, %v468, 0
      %520 = vmatprep.subr.mxu0 0.0
      %521 = vmatpush1.msra.mxu0 0.0
      %522 = vmatprep.subr.mxu0 0.0
      %523 = vmatpush1.msra.mxu0 0.0
      %524 = vmatprep.subr.mxu0 0.0
      %525 = vmatpush1.msra.mxu0 0.0
      %526 = vmatprep.subr.mxu0 0.0
      %527 = vmatpush1.msra.mxu0 0.0
      %528 = vmatprep.subr.mxu0 0.0
      %529 = vmatpush1.msra.mxu0 0.0
      %530 = vmatprep.subr.mxu0 0.0
      %531 = vmatpush1.msra.mxu0 0.0
      %532 = vmatprep.subr.mxu0 0.0
      %533 = vmatpush1.msra.mxu0 0.0
      %534 = vmatprep.subr.mxu0 0.0
      %535 = vmatpush1.msra.mxu0 0.0
      %536 = vmatprep.subr.mxu0 0.0
      %537 = vmatpush1.msra.mxu0 0.0
      %538 = vmatprep.subr.mxu0 0.0
      %539 = vmatpush1.msra.mxu0 0.0
      %540 = vmatprep.subr.mxu0 0.0
      %541 = vmatpush1.msra.mxu0 0.0
      %542 = vmatprep.subr.mxu0 0.0
      %543 = vmatpush1.msra.mxu0 0.0
      %544 = vmatprep.subr.mxu0 0.0
      %545 = vmatpush1.msra.mxu0 0.0
      %546 = vmatprep.subr.mxu0 0.0
      %547 = vmatpush1.msra.mxu0 0.0
      %548 = vmatprep.subr.mxu0 0.0
      %549 = vmatpush1.msra.mxu0 %v471
      %550 = vmatprep.subr.mxu0 0.0
      %551 = vmatpush1.msra.mxu0 %v470
      %552 = vmatprep.subr.mxu0 0.0
      %553 = vmatpush2.msra.mxu0 0.0
      %554 = vmatprep.subr.mxu0 0.0
      %555 = vmatpush2.msra.mxu0 0.0
      %556 = vmatprep.subr.mxu0 0.0
      %557 = vmatpush2.msra.mxu0 0.0
      %558 = vmatprep.subr.mxu0 0.0
      %559 = vmatpush2.msra.mxu0 0.0
      %560 = vmatprep.subr.mxu0 0.0
      %561 = vmatpush2.msra.mxu0 0.0
      %562 = vmatprep.subr.mxu0 0.0
      %563 = vmatpush2.msra.mxu0 0.0
      %564 = vmatprep.subr.mxu0 0.0
      %565 = vmatpush2.msra.mxu0 0.0
      %566 = vmatprep.subr.mxu0 0.0
      %567 = vmatpush2.msra.mxu0 0.0
      %568 = vmatprep.subr.mxu0 0.0
      %569 = vmatpush2.msra.mxu0 0.0
      %570 = vmatprep.subr.mxu0 0.0
      %571 = vmatpush2.msra.mxu0 0.0
      %572 = vmatprep.subr.mxu0 0.0
      %573 = vmatpush2.msra.mxu0 0.0
      %574 = vmatprep.subr.mxu0 0.0
      %575 = vmatpush2.msra.mxu0 0.0
      %576 = vmatprep.subr.mxu0 0.0
      %577 = vmatpush2.msra.mxu0 0.0
      %578 = vmatprep.subr.mxu0 0.0
      %579 = vmatpush2.msra.mxu0 0.0
      %580 = vmatprep.subr.mxu0 0.0
      %581 = vmatpush2.msra.mxu0 0.0
      %582 = vmatprep.subr.mxu0 0.0
      %583 = vmatpush2.msra.mxu0 0.0
      %584 = vmatprep.mubr.f32.mxu0 0.0
      %585 = vmatmul.mubr.f32.gmra.mxu0 %v473
      %v586 = vpop.f32.mrf.mxu0
      %v587 = vadd.f32 0.0, %v586
      %v588 = vpop.f32.mrf.mxu0
      %589 = vmatprep.mubr.f32.mxu0 0.0
      %590 = vmatmul.mubr.f32.gmra.mxu0 %v476
      %v591 = vpop.f32.mrf.mxu0
      %v592 = vadd.f32 0.0, %v591
      %v593 = vpop.f32.mrf.mxu0
      %594 = vmatprep.mubr.f32.mxu0 0.0
      %595 = vmatmul.mubr.f32.gmra.mxu0 %v479
      %v596 = vpop.f32.mrf.mxu0
      %v597 = vadd.f32 0.0, %v596
      %v598 = vpop.f32.mrf.mxu0
      %599 = vmatprep.mubr.f32.mxu0 0.0
      %600 = vmatmul.mubr.f32.gmra.mxu0 %v482
      %v601 = vpop.f32.mrf.mxu0
      %v602 = vadd.f32 0.0, %v601
      %v603 = vpop.f32.mrf.mxu0
      %604 = vmatprep.mubr.f32.mxu0 0.0
      %605 = vmatmul.mubr.f32.gmra.mxu0 %v485
      %v606 = vpop.f32.mrf.mxu0
      %v607 = vadd.f32 0.0, %v606
      %v608 = vpop.f32.mrf.mxu0
      %609 = vmatprep.mubr.f32.mxu0 0.0
      %610 = vmatmul.mubr.f32.gmra.mxu0 %v488
      %v611 = vpop.f32.mrf.mxu0
      %v612 = vadd.f32 0.0, %v611
      %v613 = vpop.f32.mrf.mxu0
      %614 = vmatprep.mubr.f32.mxu0 0.0
      %615 = vmatmul.mubr.f32.gmra.mxu0 %v491
      %v616 = vpop.f32.mrf.mxu0
      %v617 = vadd.f32 0.0, %v616
      %v618 = vpop.f32.mrf.mxu0
      %619 = vmatprep.mubr.f32.mxu0 0.0
      %620 = vmatmul.mubr.f32.gmra.mxu0 %v494
      %v621 = vpop.f32.mrf.mxu0
      %v622 = vadd.f32 0.0, %v621
      %v623 = vpop.f32.mrf.mxu0
      %624 = vmatprep.mubr.f32.mxu0 0.0
      %625 = vmatmul.mubr.f32.gmra.mxu0 %v497
      %v626 = vpop.f32.mrf.mxu0
      %v627 = vadd.f32 0.0, %v626
      %v628 = vpop.f32.mrf.mxu0
      %629 = vmatprep.mubr.f32.mxu0 0.0
      %630 = vmatmul.mubr.f32.gmra.mxu0 %v500
      %v631 = vpop.f32.mrf.mxu0
      %v632 = vadd.f32 0.0, %v631
      %v633 = vpop.f32.mrf.mxu0
      %634 = vmatprep.mubr.f32.mxu0 0.0
      %635 = vmatmul.mubr.f32.gmra.mxu0 %v503
      %v636 = vpop.f32.mrf.mxu0
      %v637 = vadd.f32 0.0, %v636
      %v638 = vpop.f32.mrf.mxu0
      %639 = vmatprep.mubr.f32.mxu0 0.0
      %640 = vmatmul.mubr.f32.gmra.mxu0 %v506
      %v641 = vpop.f32.mrf.mxu0
      %v642 = vadd.f32 0.0, %v641
      %v643 = vpop.f32.mrf.mxu0
      %644 = vmatprep.mubr.f32.mxu0 0.0
      %645 = vmatmul.mubr.f32.gmra.mxu0 %v509
      %v646 = vpop.f32.mrf.mxu0
      %v647 = vadd.f32 0.0, %v646
      %v648 = vpop.f32.mrf.mxu0
      %649 = vmatprep.mubr.f32.mxu0 0.0
      %650 = vmatmul.mubr.f32.gmra.mxu0 %v512
      %v651 = vpop.f32.mrf.mxu0
      %v652 = vadd.f32 0.0, %v651
      %v653 = vpop.f32.mrf.mxu0
      %654 = vmatprep.mubr.f32.mxu0 0.0
      %655 = vmatmul.mubr.f32.gmra.mxu0 %v515
      %v656 = vpop.f32.mrf.mxu0
      %v657 = vadd.f32 0.0, %v656
      %v658 = vpop.f32.mrf.mxu0
      %659 = vmatprep.mubr.f32.mxu0 0.0
      %660 = vmatmul.mubr.f32.gmra.mxu0 %v518
      %v661 = vpop.f32.mrf.mxu0
      %v662 = vadd.f32 0.0, %v661
      %v663 = vpop.f32.mrf.mxu0
      %664 = vdwg.mxu0
      %v666 = vsel %vm252, %v435, 0
      %v669 = vsel %vm252, %v436, 0
      %v672 = vsel %vm252, %v437, 0
      %v675 = vsel %vm252, %v438, 0
      %v678 = vsel %vm252, %v439, 0
      %v681 = vsel %vm252, %v440, 0
      %v684 = vsel %vm252, %v441, 0
      %v687 = vsel %vm252, %v442, 0
      %v690 = vsel %vm252, %v443, 0
      %v693 = vsel %vm252, %v444, 0
      %v696 = vsel %vm252, %v445, 0
      %v699 = vsel %vm252, %v446, 0
      %v702 = vsel %vm252, %v447, 0
      %v705 = vsel %vm252, %v448, 0
      %v708 = vsel %vm252, %v449, 0
      %v711 = vsel %vm252, %v450, 0
      %713 = vmatprep.subr.mxu0 0.0
      %714 = vmatpush1.msra.mxu0 0.0
      %715 = vmatprep.subr.mxu0 0.0
      %716 = vmatpush1.msra.mxu0 0.0
      %717 = vmatprep.subr.mxu0 0.0
      %718 = vmatpush1.msra.mxu0 0.0
      %719 = vmatprep.subr.mxu0 0.0
      %720 = vmatpush1.msra.mxu0 0.0
      %721 = vmatprep.subr.mxu0 0.0
      %722 = vmatpush1.msra.mxu0 0.0
      %723 = vmatprep.subr.mxu0 0.0
      %724 = vmatpush1.msra.mxu0 0.0
      %725 = vmatprep.subr.mxu0 0.0
      %726 = vmatpush1.msra.mxu0 0.0
      %727 = vmatprep.subr.mxu0 0.0
      %728 = vmatpush1.msra.mxu0 0.0
      %729 = vmatprep.subr.mxu0 0.0
      %730 = vmatpush1.msra.mxu0 0.0
      %731 = vmatprep.subr.mxu0 0.0
      %732 = vmatpush1.msra.mxu0 0.0
      %733 = vmatprep.subr.mxu0 0.0
      %734 = vmatpush1.msra.mxu0 0.0
      %735 = vmatprep.subr.mxu0 0.0
      %736 = vmatpush1.msra.mxu0 0.0
      %737 = vmatprep.subr.mxu0 0.0
      %738 = vmatpush1.msra.mxu0 0.0
      %739 = vmatprep.subr.mxu0 0.0
      %740 = vmatpush1.msra.mxu0 0.0
      %741 = vmatprep.subr.mxu0 0.0
      %742 = vmatpush1.msra.mxu0 %v452
      %743 = vmatprep.subr.mxu0 0.0
      %744 = vmatpush1.msra.mxu0 %v451
      %745 = vmatprep.subr.mxu0 0.0
      %746 = vmatpush2.msra.mxu0 0.0
      %747 = vmatprep.subr.mxu0 0.0
      %748 = vmatpush2.msra.mxu0 0.0
      %749 = vmatprep.subr.mxu0 0.0
      %750 = vmatpush2.msra.mxu0 0.0
      %751 = vmatprep.subr.mxu0 0.0
      %752 = vmatpush2.msra.mxu0 0.0
      %753 = vmatprep.subr.mxu0 0.0
      %754 = vmatpush2.msra.mxu0 0.0
      %755 = vmatprep.subr.mxu0 0.0
      %756 = vmatpush2.msra.mxu0 0.0
      %757 = vmatprep.subr.mxu0 0.0
      %758 = vmatpush2.msra.mxu0 0.0
      %759 = vmatprep.subr.mxu0 0.0
      %760 = vmatpush2.msra.mxu0 0.0
      %761 = vmatprep.subr.mxu0 0.0
      %762 = vmatpush2.msra.mxu0 0.0
      %763 = vmatprep.subr.mxu0 0.0
      %764 = vmatpush2.msra.mxu0 0.0
      %765 = vmatprep.subr.mxu0 0.0
      %766 = vmatpush2.msra.mxu0 0.0
      %767 = vmatprep.subr.mxu0 0.0
      %768 = vmatpush2.msra.mxu0 0.0
      %769 = vmatprep.subr.mxu0 0.0
      %770 = vmatpush2.msra.mxu0 0.0
      %771 = vmatprep.subr.mxu0 0.0
      %772 = vmatpush2.msra.mxu0 0.0
      %773 = vmatprep.subr.mxu0 0.0
      %774 = vmatpush2.msra.mxu0 0.0
      %775 = vmatprep.subr.mxu0 0.0
      %776 = vmatpush2.msra.mxu0 0.0
      %777 = vmatprep.mubr.f32.mxu0 0.0
      %778 = vmatmul.mubr.f32.gmra.mxu0 %v666
      %v779 = vpop.f32.mrf.mxu0
      %v780 = vadd.f32 %v587, %v779
      %v781 = vpop.f32.mrf.mxu0
      %782 = vmatprep.mubr.f32.mxu0 0.0
      %783 = vmatmul.mubr.f32.gmra.mxu0 %v669
      %v784 = vpop.f32.mrf.mxu0
      %v785 = vadd.f32 %v592, %v784
      %v786 = vpop.f32.mrf.mxu0
      %787 = vmatprep.mubr.f32.mxu0 0.0
      %788 = vmatmul.mubr.f32.gmra.mxu0 %v672
      %v789 = vpop.f32.mrf.mxu0
      %v790 = vadd.f32 %v597, %v789
      %v791 = vpop.f32.mrf.mxu0
      %792 = vmatprep.mubr.f32.mxu0 0.0
      %793 = vmatmul.mubr.f32.gmra.mxu0 %v675
      %v794 = vpop.f32.mrf.mxu0
      %v795 = vadd.f32 %v602, %v794
      %v796 = vpop.f32.mrf.mxu0
      %797 = vmatprep.mubr.f32.mxu0 0.0
      %798 = vmatmul.mubr.f32.gmra.mxu0 %v678
      %v799 = vpop.f32.mrf.mxu0
      %v800 = vadd.f32 %v607, %v799
      %v801 = vpop.f32.mrf.mxu0
      %802 = vmatprep.mubr.f32.mxu0 0.0
      %803 = vmatmul.mubr.f32.gmra.mxu0 %v681
      %v804 = vpop.f32.mrf.mxu0
      %v805 = vadd.f32 %v612, %v804
      %v806 = vpop.f32.mrf.mxu0
      %807 = vmatprep.mubr.f32.mxu0 0.0
      %808 = vmatmul.mubr.f32.gmra.mxu0 %v684
      %v809 = vpop.f32.mrf.mxu0
      %v810 = vadd.f32 %v617, %v809
      %v811 = vpop.f32.mrf.mxu0
      %812 = vmatprep.mubr.f32.mxu0 0.0
      %813 = vmatmul.mubr.f32.gmra.mxu0 %v687
      %v814 = vpop.f32.mrf.mxu0
      %v815 = vadd.f32 %v622, %v814
      %v816 = vpop.f32.mrf.mxu0
      %817 = vmatprep.mubr.f32.mxu0 0.0
      %818 = vmatmul.mubr.f32.gmra.mxu0 %v690
      %v819 = vpop.f32.mrf.mxu0
      %v820 = vadd.f32 %v627, %v819
      %v821 = vpop.f32.mrf.mxu0
      %822 = vmatprep.mubr.f32.mxu0 0.0
      %823 = vmatmul.mubr.f32.gmra.mxu0 %v693
      %v824 = vpop.f32.mrf.mxu0
      %v825 = vadd.f32 %v632, %v824
      %v826 = vpop.f32.mrf.mxu0
      %827 = vmatprep.mubr.f32.mxu0 0.0
      %828 = vmatmul.mubr.f32.gmra.mxu0 %v696
      %v829 = vpop.f32.mrf.mxu0
      %v830 = vadd.f32 %v637, %v829
      %v831 = vpop.f32.mrf.mxu0
      %832 = vmatprep.mubr.f32.mxu0 0.0
      %833 = vmatmul.mubr.f32.gmra.mxu0 %v699
      %v834 = vpop.f32.mrf.mxu0
      %v835 = vadd.f32 %v642, %v834
      %v836 = vpop.f32.mrf.mxu0
      %837 = vmatprep.mubr.f32.mxu0 0.0
      %838 = vmatmul.mubr.f32.gmra.mxu0 %v702
      %v839 = vpop.f32.mrf.mxu0
      %v840 = vadd.f32 %v647, %v839
      %v841 = vpop.f32.mrf.mxu0
      %842 = vmatprep.mubr.f32.mxu0 0.0
      %843 = vmatmul.mubr.f32.gmra.mxu0 %v705
      %v844 = vpop.f32.mrf.mxu0
      %v845 = vadd.f32 %v652, %v844
      %v846 = vpop.f32.mrf.mxu0
      %847 = vmatprep.mubr.f32.mxu0 0.0
      %848 = vmatmul.mubr.f32.gmra.mxu0 %v708
      %v849 = vpop.f32.mrf.mxu0
      %v850 = vadd.f32 %v657, %v849
      %v851 = vpop.f32.mrf.mxu0
      %852 = vmatprep.mubr.f32.mxu0 0.0
      %853 = vmatmul.mubr.f32.gmra.mxu0 %v711
      %v854 = vpop.f32.mrf.mxu0
      %v855 = vadd.f32 %v662, %v854
      %v856 = vpop.f32.mrf.mxu0
      %857 = vdwg.mxu0
      %v858 = vld [vmem:[#allocation2 + $0x2] sm:$0xff]
      %v859 = vld [vmem:[#allocation2 + $0xa] sm:$0xff]
      %v860 = vld [vmem:[#allocation2 + $0x12] sm:$0xff]
      %v861 = vld [vmem:[#allocation2 + $0x1a] sm:$0xff]
      %v862 = vld [vmem:[#allocation2 + $0x22] sm:$0xff]
      %v863 = vld [vmem:[#allocation2 + $0x2a] sm:$0xff]
      %v864 = vld [vmem:[#allocation2 + $0x32] sm:$0xff]
      %v865 = vld [vmem:[#allocation2 + $0x3a] sm:$0xff]
      %v866 = vld [vmem:[#allocation2 + $0x42] sm:$0xff]
      %v867 = vld [vmem:[#allocation2 + $0x4a] sm:$0xff]
      %v868 = vld [vmem:[#allocation2 + $0x52] sm:$0xff]
      %v869 = vld [vmem:[#allocation2 + $0x5a] sm:$0xff]
      %v870 = vld [vmem:[#allocation2 + $0x62] sm:$0xff]
      %v871 = vld [vmem:[#allocation2 + $0x6a] sm:$0xff]
      %v872 = vld [vmem:[#allocation2 + $0x72] sm:$0xff]
      %v873 = vld [vmem:[#allocation2 + $0x7a] sm:$0xff]
      %s874 = scalar_lea.vmem %s3, 32
      %v875 = vld [vmem:[%s874] sm:$0xff]
      %v876 = vld [vmem:[%s874 + $0x8] sm:$0xff]
      %v878 = vsel %vm252, %v858, 0
      %v881 = vsel %vm252, %v859, 0
      %v884 = vsel %vm252, %v860, 0
      %v887 = vsel %vm252, %v861, 0
      %v890 = vsel %vm252, %v862, 0
      %v893 = vsel %vm252, %v863, 0
      %v896 = vsel %vm252, %v864, 0
      %v899 = vsel %vm252, %v865, 0
      %v902 = vsel %vm252, %v866, 0
      %v905 = vsel %vm252, %v867, 0
      %v908 = vsel %vm252, %v868, 0
      %v911 = vsel %vm252, %v869, 0
      %v914 = vsel %vm252, %v870, 0
      %v917 = vsel %vm252, %v871, 0
      %v920 = vsel %vm252, %v872, 0
      %v923 = vsel %vm252, %v873, 0
      %925 = vmatprep.subr.mxu0 0.0
      %926 = vmatpush1.msra.mxu0 0.0
      %927 = vmatprep.subr.mxu0 0.0
      %928 = vmatpush1.msra.mxu0 0.0
      %929 = vmatprep.subr.mxu0 0.0
      %930 = vmatpush1.msra.mxu0 0.0
      %931 = vmatprep.subr.mxu0 0.0
      %932 = vmatpush1.msra.mxu0 0.0
      %933 = vmatprep.subr.mxu0 0.0
      %934 = vmatpush1.msra.mxu0 0.0
      %935 = vmatprep.subr.mxu0 0.0
      %936 = vmatpush1.msra.mxu0 0.0
      %937 = vmatprep.subr.mxu0 0.0
      %938 = vmatpush1.msra.mxu0 0.0
      %939 = vmatprep.subr.mxu0 0.0
      %940 = vmatpush1.msra.mxu0 0.0
      %941 = vmatprep.subr.mxu0 0.0
      %942 = vmatpush1.msra.mxu0 0.0
      %943 = vmatprep.subr.mxu0 0.0
      %944 = vmatpush1.msra.mxu0 0.0
      %945 = vmatprep.subr.mxu0 0.0
      %946 = vmatpush1.msra.mxu0 0.0
      %947 = vmatprep.subr.mxu0 0.0
      %948 = vmatpush1.msra.mxu0 0.0
      %949 = vmatprep.subr.mxu0 0.0
      %950 = vmatpush1.msra.mxu0 0.0
      %951 = vmatprep.subr.mxu0 0.0
      %952 = vmatpush1.msra.mxu0 0.0
      %953 = vmatprep.subr.mxu0 0.0
      %954 = vmatpush1.msra.mxu0 %v876
      %955 = vmatprep.subr.mxu0 0.0
      %956 = vmatpush1.msra.mxu0 %v875
      %957 = vmatprep.subr.mxu0 0.0
      %958 = vmatpush2.msra.mxu0 0.0
      %959 = vmatprep.subr.mxu0 0.0
      %960 = vmatpush2.msra.mxu0 0.0
      %961 = vmatprep.subr.mxu0 0.0
      %962 = vmatpush2.msra.mxu0 0.0
      %963 = vmatprep.subr.mxu0 0.0
      %964 = vmatpush2.msra.mxu0 0.0
      %965 = vmatprep.subr.mxu0 0.0
      %966 = vmatpush2.msra.mxu0 0.0
      %967 = vmatprep.subr.mxu0 0.0
      %968 = vmatpush2.msra.mxu0 0.0
      %969 = vmatprep.subr.mxu0 0.0
      %970 = vmatpush2.msra.mxu0 0.0
      %971 = vmatprep.subr.mxu0 0.0
      %972 = vmatpush2.msra.mxu0 0.0
      %973 = vmatprep.subr.mxu0 0.0
      %974 = vmatpush2.msra.mxu0 0.0
      %975 = vmatprep.subr.mxu0 0.0
      %976 = vmatpush2.msra.mxu0 0.0
      %977 = vmatprep.subr.mxu0 0.0
      %978 = vmatpush2.msra.mxu0 0.0
      %979 = vmatprep.subr.mxu0 0.0
      %980 = vmatpush2.msra.mxu0 0.0
      %981 = vmatprep.subr.mxu0 0.0
      %982 = vmatpush2.msra.mxu0 0.0
      %983 = vmatprep.subr.mxu0 0.0
      %984 = vmatpush2.msra.mxu0 0.0
      %985 = vmatprep.subr.mxu0 0.0
      %986 = vmatpush2.msra.mxu0 0.0
      %987 = vmatprep.subr.mxu0 0.0
      %988 = vmatpush2.msra.mxu0 0.0
      %989 = vmatprep.mubr.f32.mxu0 0.0
      %990 = vmatmul.mubr.f32.gmra.mxu0 %v878
      %v991 = vpop.f32.mrf.mxu0
      %v992 = vadd.f32 0.0, %v991
      %v993 = vpop.f32.mrf.mxu0
      %994 = vmatprep.mubr.f32.mxu0 0.0
      %995 = vmatmul.mubr.f32.gmra.mxu0 %v881
      %v996 = vpop.f32.mrf.mxu0
      %v997 = vadd.f32 0.0, %v996
      %v998 = vpop.f32.mrf.mxu0
      %999 = vmatprep.mubr.f32.mxu0 0.0
      %1000 = vmatmul.mubr.f32.gmra.mxu0 %v884
      %v1001 = vpop.f32.mrf.mxu0
      %v1002 = vadd.f32 0.0, %v1001
      %v1003 = vpop.f32.mrf.mxu0
      %1004 = vmatprep.mubr.f32.mxu0 0.0
      %1005 = vmatmul.mubr.f32.gmra.mxu0 %v887
      %v1006 = vpop.f32.mrf.mxu0
      %v1007 = vadd.f32 0.0, %v1006
      %v1008 = vpop.f32.mrf.mxu0
      %1009 = vmatprep.mubr.f32.mxu0 0.0
      %1010 = vmatmul.mubr.f32.gmra.mxu0 %v890
      %v1011 = vpop.f32.mrf.mxu0
      %v1012 = vadd.f32 0.0, %v1011
      %v1013 = vpop.f32.mrf.mxu0
      %1014 = vmatprep.mubr.f32.mxu0 0.0
      %1015 = vmatmul.mubr.f32.gmra.mxu0 %v893
      %v1016 = vpop.f32.mrf.mxu0
      %v1017 = vadd.f32 0.0, %v1016
      %v1018 = vpop.f32.mrf.mxu0
      %1019 = vmatprep.mubr.f32.mxu0 0.0
      %1020 = vmatmul.mubr.f32.gmra.mxu0 %v896
      %v1021 = vpop.f32.mrf.mxu0
      %v1022 = vadd.f32 0.0, %v1021
      %v1023 = vpop.f32.mrf.mxu0
      %1024 = vmatprep.mubr.f32.mxu0 0.0
      %1025 = vmatmul.mubr.f32.gmra.mxu0 %v899
      %v1026 = vpop.f32.mrf.mxu0
      %v1027 = vadd.f32 0.0, %v1026
      %v1028 = vpop.f32.mrf.mxu0
      %1029 = vmatprep.mubr.f32.mxu0 0.0
      %1030 = vmatmul.mubr.f32.gmra.mxu0 %v902
      %v1031 = vpop.f32.mrf.mxu0
      %v1032 = vadd.f32 0.0, %v1031
      %v1033 = vpop.f32.mrf.mxu0
      %1034 = vmatprep.mubr.f32.mxu0 0.0
      %1035 = vmatmul.mubr.f32.gmra.mxu0 %v905
      %v1036 = vpop.f32.mrf.mxu0
      %v1037 = vadd.f32 0.0, %v1036
      %v1038 = vpop.f32.mrf.mxu0
      %1039 = vmatprep.mubr.f32.mxu0 0.0
      %1040 = vmatmul.mubr.f32.gmra.mxu0 %v908
      %v1041 = vpop.f32.mrf.mxu0
      %v1042 = vadd.f32 0.0, %v1041
      %v1043 = vpop.f32.mrf.mxu0
      %1044 = vmatprep.mubr.f32.mxu0 0.0
      %1045 = vmatmul.mubr.f32.gmra.mxu0 %v911
      %v1046 = vpop.f32.mrf.mxu0
      %v1047 = vadd.f32 0.0, %v1046
      %v1048 = vpop.f32.mrf.mxu0
      %1049 = vmatprep.mubr.f32.mxu0 0.0
      %1050 = vmatmul.mubr.f32.gmra.mxu0 %v914
      %v1051 = vpop.f32.mrf.mxu0
      %v1052 = vadd.f32 0.0, %v1051
      %v1053 = vpop.f32.mrf.mxu0
      %1054 = vmatprep.mubr.f32.mxu0 0.0
      %1055 = vmatmul.mubr.f32.gmra.mxu0 %v917
      %v1056 = vpop.f32.mrf.mxu0
      %v1057 = vadd.f32 0.0, %v1056
      %v1058 = vpop.f32.mrf.mxu0
      %1059 = vmatprep.mubr.f32.mxu0 0.0
      %1060 = vmatmul.mubr.f32.gmra.mxu0 %v920
      %v1061 = vpop.f32.mrf.mxu0
      %v1062 = vadd.f32 0.0, %v1061
      %v1063 = vpop.f32.mrf.mxu0
      %1064 = vmatprep.mubr.f32.mxu0 0.0
      %1065 = vmatmul.mubr.f32.gmra.mxu0 %v923
      %v1066 = vpop.f32.mrf.mxu0
      %v1067 = vadd.f32 0.0, %v1066
      %v1068 = vpop.f32.mrf.mxu0
      %1069 = vdwg.mxu0
      %v1070 = vadd.f32 %v780, %v992
      %v1071 = vadd.f32 %v785, %v997
      %v1072 = vadd.f32 %v790, %v1002
      %v1073 = vadd.f32 %v795, %v1007
      %v1074 = vadd.f32 %v800, %v1012
      %v1075 = vadd.f32 %v805, %v1017
      %v1076 = vadd.f32 %v810, %v1022
      %v1077 = vadd.f32 %v815, %v1027
      %v1078 = vadd.f32 %v820, %v1032
      %v1079 = vadd.f32 %v825, %v1037
      %v1080 = vadd.f32 %v830, %v1042
      %v1081 = vadd.f32 %v835, %v1047
      %v1082 = vadd.f32 %v840, %v1052
      %v1083 = vadd.f32 %v845, %v1057
      %v1084 = vadd.f32 %v850, %v1062
      %v1085 = vadd.f32 %v855, %v1067
      %v1086 = vld [vmem:[#allocation2 + $0x10] sm:$0xff]
      %v1087 = vld [vmem:[#allocation2 + $0x18] sm:$0xff]
      %v1088 = vld [vmem:[#allocation2 + $0x20] sm:$0xff]
      %v1089 = vld [vmem:[#allocation2 + $0x28] sm:$0xff]
      %v1090 = vld [vmem:[#allocation2 + $0x30] sm:$0xff]
      %v1091 = vld [vmem:[#allocation2 + $0x38] sm:$0xff]
      %v1092 = vld [vmem:[#allocation2 + $0x40] sm:$0xff]
      %v1093 = vld [vmem:[#allocation2 + $0x48] sm:$0xff]
      %v1094 = vld [vmem:[#allocation2 + $0x50] sm:$0xff]
      %v1095 = vld [vmem:[#allocation2 + $0x58] sm:$0xff]
      %v1096 = vld [vmem:[#allocation2 + $0x60] sm:$0xff]
      %v1097 = vld [vmem:[#allocation2 + $0x68] sm:$0xff]
      %v1098 = vld [vmem:[#allocation2 + $0x70] sm:$0xff]
      %v1099 = vld [vmem:[#allocation2 + $0x78] sm:$0xff]
      %v1100 = vld [vmem:[#allocation2 + $0x80] sm:$0xff]
      %v1101 = vld [vmem:[#allocation2 + $0x88] sm:$0xff]
      %s1102 = scalar_lea.vmem %s3, 48
      %v1103 = vld [vmem:[%s1102] sm:$0xff]
      %v1104 = vld [vmem:[%s1102 + $0x8] sm:$0xff]
      %v1106 = vsel %vm252, %v1086, 0
      %v1109 = vsel %vm252, %v1087, 0
      %v1112 = vsel %vm252, %v1088, 0
      %v1115 = vsel %vm252, %v1089, 0
      %v1118 = vsel %vm252, %v1090, 0
      %v1121 = vsel %vm252, %v1091, 0
      %v1124 = vsel %vm252, %v1092, 0
      %v1127 = vsel %vm252, %v1093, 0
      %v1130 = vsel %vm252, %v1094, 0
      %v1133 = vsel %vm252, %v1095, 0
      %v1136 = vsel %vm252, %v1096, 0
      %v1139 = vsel %vm252, %v1097, 0
      %v1142 = vsel %vm252, %v1098, 0
      %v1145 = vsel %vm252, %v1099, 0
      %v1148 = vsel %vm252, %v1100, 0
      %v1151 = vsel %vm252, %v1101, 0
      %1153 = vmatprep.subr.mxu0 0.0
      %1154 = vmatpush1.msra.mxu0 0.0
      %1155 = vmatprep.subr.mxu0 0.0
      %1156 = vmatpush1.msra.mxu0 0.0
      %1157 = vmatprep.subr.mxu0 0.0
      %1158 = vmatpush1.msra.mxu0 0.0
      %1159 = vmatprep.subr.mxu0 0.0
      %1160 = vmatpush1.msra.mxu0 0.0
      %1161 = vmatprep.subr.mxu0 0.0
      %1162 = vmatpush1.msra.mxu0 0.0
      %1163 = vmatprep.subr.mxu0 0.0
      %1164 = vmatpush1.msra.mxu0 0.0
      %1165 = vmatprep.subr.mxu0 0.0
      %1166 = vmatpush1.msra.mxu0 0.0
      %1167 = vmatprep.subr.mxu0 0.0
      %1168 = vmatpush1.msra.mxu0 0.0
      %1169 = vmatprep.subr.mxu0 0.0
      %1170 = vmatpush1.msra.mxu0 0.0
      %1171 = vmatprep.subr.mxu0 0.0
      %1172 = vmatpush1.msra.mxu0 0.0
      %1173 = vmatprep.subr.mxu0 0.0
      %1174 = vmatpush1.msra.mxu0 0.0
      %1175 = vmatprep.subr.mxu0 0.0
      %1176 = vmatpush1.msra.mxu0 0.0
      %1177 = vmatprep.subr.mxu0 0.0
      %1178 = vmatpush1.msra.mxu0 0.0
      %1179 = vmatprep.subr.mxu0 0.0
      %1180 = vmatpush1.msra.mxu0 0.0
      %1181 = vmatprep.subr.mxu0 0.0
      %1182 = vmatpush1.msra.mxu0 %v1104
      %1183 = vmatprep.subr.mxu0 0.0
      %1184 = vmatpush1.msra.mxu0 %v1103
      %1185 = vmatprep.subr.mxu0 0.0
      %1186 = vmatpush2.msra.mxu0 0.0
      %1187 = vmatprep.subr.mxu0 0.0
      %1188 = vmatpush2.msra.mxu0 0.0
      %1189 = vmatprep.subr.mxu0 0.0
      %1190 = vmatpush2.msra.mxu0 0.0
      %1191 = vmatprep.subr.mxu0 0.0
      %1192 = vmatpush2.msra.mxu0 0.0
      %1193 = vmatprep.subr.mxu0 0.0
      %1194 = vmatpush2.msra.mxu0 0.0
      %1195 = vmatprep.subr.mxu0 0.0
      %1196 = vmatpush2.msra.mxu0 0.0
      %1197 = vmatprep.subr.mxu0 0.0
      %1198 = vmatpush2.msra.mxu0 0.0
      %1199 = vmatprep.subr.mxu0 0.0
      %1200 = vmatpush2.msra.mxu0 0.0
      %1201 = vmatprep.subr.mxu0 0.0
      %1202 = vmatpush2.msra.mxu0 0.0
      %1203 = vmatprep.subr.mxu0 0.0
      %1204 = vmatpush2.msra.mxu0 0.0
      %1205 = vmatprep.subr.mxu0 0.0
      %1206 = vmatpush2.msra.mxu0 0.0
      %1207 = vmatprep.subr.mxu0 0.0
      %1208 = vmatpush2.msra.mxu0 0.0
      %1209 = vmatprep.subr.mxu0 0.0
      %1210 = vmatpush2.msra.mxu0 0.0
      %1211 = vmatprep.subr.mxu0 0.0
      %1212 = vmatpush2.msra.mxu0 0.0
      %1213 = vmatprep.subr.mxu0 0.0
      %1214 = vmatpush2.msra.mxu0 0.0
      %1215 = vmatprep.subr.mxu0 0.0
      %1216 = vmatpush2.msra.mxu0 0.0
      %1217 = vmatprep.mubr.f32.mxu0 0.0
      %1218 = vmatmul.mubr.f32.gmra.mxu0 %v1106
      %v1219 = vpop.f32.mrf.mxu0
      %v1220 = vadd.f32 0.0, %v1219
      %v1221 = vpop.f32.mrf.mxu0
      %1222 = vmatprep.mubr.f32.mxu0 0.0
      %1223 = vmatmul.mubr.f32.gmra.mxu0 %v1109
      %v1224 = vpop.f32.mrf.mxu0
      %v1225 = vadd.f32 0.0, %v1224
      %v1226 = vpop.f32.mrf.mxu0
      %1227 = vmatprep.mubr.f32.mxu0 0.0
      %1228 = vmatmul.mubr.f32.gmra.mxu0 %v1112
      %v1229 = vpop.f32.mrf.mxu0
      %v1230 = vadd.f32 0.0, %v1229
      %v1231 = vpop.f32.mrf.mxu0
      %1232 = vmatprep.mubr.f32.mxu0 0.0
      %1233 = vmatmul.mubr.f32.gmra.mxu0 %v1115
      %v1234 = vpop.f32.mrf.mxu0
      %v1235 = vadd.f32 0.0, %v1234
      %v1236 = vpop.f32.mrf.mxu0
      %1237 = vmatprep.mubr.f32.mxu0 0.0
      %1238 = vmatmul.mubr.f32.gmra.mxu0 %v1118
      %v1239 = vpop.f32.mrf.mxu0
      %v1240 = vadd.f32 0.0, %v1239
      %v1241 = vpop.f32.mrf.mxu0
      %1242 = vmatprep.mubr.f32.mxu0 0.0
      %1243 = vmatmul.mubr.f32.gmra.mxu0 %v1121
      %v1244 = vpop.f32.mrf.mxu0
      %v1245 = vadd.f32 0.0, %v1244
      %v1246 = vpop.f32.mrf.mxu0
      %1247 = vmatprep.mubr.f32.mxu0 0.0
      %1248 = vmatmul.mubr.f32.gmra.mxu0 %v1124
      %v1249 = vpop.f32.mrf.mxu0
      %v1250 = vadd.f32 0.0, %v1249
      %v1251 = vpop.f32.mrf.mxu0
      %1252 = vmatprep.mubr.f32.mxu0 0.0
      %1253 = vmatmul.mubr.f32.gmra.mxu0 %v1127
      %v1254 = vpop.f32.mrf.mxu0
      %v1255 = vadd.f32 0.0, %v1254
      %v1256 = vpop.f32.mrf.mxu0
      %1257 = vmatprep.mubr.f32.mxu0 0.0
      %1258 = vmatmul.mubr.f32.gmra.mxu0 %v1130
      %v1259 = vpop.f32.mrf.mxu0
      %v1260 = vadd.f32 0.0, %v1259
      %v1261 = vpop.f32.mrf.mxu0
      %1262 = vmatprep.mubr.f32.mxu0 0.0
      %1263 = vmatmul.mubr.f32.gmra.mxu0 %v1133
      %v1264 = vpop.f32.mrf.mxu0
      %v1265 = vadd.f32 0.0, %v1264
      %v1266 = vpop.f32.mrf.mxu0
      %1267 = vmatprep.mubr.f32.mxu0 0.0
      %1268 = vmatmul.mubr.f32.gmra.mxu0 %v1136
      %v1269 = vpop.f32.mrf.mxu0
      %v1270 = vadd.f32 0.0, %v1269
      %v1271 = vpop.f32.mrf.mxu0
      %1272 = vmatprep.mubr.f32.mxu0 0.0
      %1273 = vmatmul.mubr.f32.gmra.mxu0 %v1139
      %v1274 = vpop.f32.mrf.mxu0
      %v1275 = vadd.f32 0.0, %v1274
      %v1276 = vpop.f32.mrf.mxu0
      %1277 = vmatprep.mubr.f32.mxu0 0.0
      %1278 = vmatmul.mubr.f32.gmra.mxu0 %v1142
      %v1279 = vpop.f32.mrf.mxu0
      %v1280 = vadd.f32 0.0, %v1279
      %v1281 = vpop.f32.mrf.mxu0
      %1282 = vmatprep.mubr.f32.mxu0 0.0
      %1283 = vmatmul.mubr.f32.gmra.mxu0 %v1145
      %v1284 = vpop.f32.mrf.mxu0
      %v1285 = vadd.f32 0.0, %v1284
      %v1286 = vpop.f32.mrf.mxu0
      %1287 = vmatprep.mubr.f32.mxu0 0.0
      %1288 = vmatmul.mubr.f32.gmra.mxu0 %v1148
      %v1289 = vpop.f32.mrf.mxu0
      %v1290 = vadd.f32 0.0, %v1289
      %v1291 = vpop.f32.mrf.mxu0
      %1292 = vmatprep.mubr.f32.mxu0 0.0
      %1293 = vmatmul.mubr.f32.gmra.mxu0 %v1151
      %v1294 = vpop.f32.mrf.mxu0
      %v1295 = vadd.f32 0.0, %v1294
      %v1296 = vpop.f32.mrf.mxu0
      %1297 = vdwg.mxu0
      %v1298 = vadd.f32 %v1070, %v1220
      %v1299 = vadd.f32 %v1071, %v1225
      %v1300 = vadd.f32 %v1072, %v1230
      %v1301 = vadd.f32 %v1073, %v1235
      %v1302 = vadd.f32 %v1074, %v1240
      %v1303 = vadd.f32 %v1075, %v1245
      %v1304 = vadd.f32 %v1076, %v1250
      %v1305 = vadd.f32 %v1077, %v1255
      %v1306 = vadd.f32 %v1078, %v1260
      %v1307 = vadd.f32 %v1079, %v1265
      %v1308 = vadd.f32 %v1080, %v1270
      %v1309 = vadd.f32 %v1081, %v1275
      %v1310 = vadd.f32 %v1082, %v1280
      %v1311 = vadd.f32 %v1083, %v1285
      %v1312 = vadd.f32 %v1084, %v1290
      %v1313 = vadd.f32 %v1085, %v1295
      %v1314 = vld [vmem:[#allocation2 + $0x11] sm:$0xff]
      %v1315 = vld [vmem:[#allocation2 + $0x19] sm:$0xff]
      %v1316 = vld [vmem:[#allocation2 + $0x21] sm:$0xff]
      %v1317 = vld [vmem:[#allocation2 + $0x29] sm:$0xff]
      %v1318 = vld [vmem:[#allocation2 + $0x31] sm:$0xff]
      %v1319 = vld [vmem:[#allocation2 + $0x39] sm:$0xff]
      %v1320 = vld [vmem:[#allocation2 + $0x41] sm:$0xff]
      %v1321 = vld [vmem:[#allocation2 + $0x49] sm:$0xff]
      %v1322 = vld [vmem:[#allocation2 + $0x51] sm:$0xff]
      %v1323 = vld [vmem:[#allocation2 + $0x59] sm:$0xff]
      %v1324 = vld [vmem:[#allocation2 + $0x61] sm:$0xff]
      %v1325 = vld [vmem:[#allocation2 + $0x69] sm:$0xff]
      %v1326 = vld [vmem:[#allocation2 + $0x71] sm:$0xff]
      %v1327 = vld [vmem:[#allocation2 + $0x79] sm:$0xff]
      %v1328 = vld [vmem:[#allocation2 + $0x81] sm:$0xff]
      %v1329 = vld [vmem:[#allocation2 + $0x89] sm:$0xff]
      %s1330 = scalar_lea.vmem %s3, 64
      %v1331 = vld [vmem:[%s1330] sm:$0xff]
      %v1332 = vld [vmem:[%s1330 + $0x8] sm:$0xff]
      %v1334 = vsel %vm252, %v1314, 0
      %v1337 = vsel %vm252, %v1315, 0
      %v1340 = vsel %vm252, %v1316, 0
      %v1343 = vsel %vm252, %v1317, 0
      %v1346 = vsel %vm252, %v1318, 0
      %v1349 = vsel %vm252, %v1319, 0
      %v1352 = vsel %vm252, %v1320, 0
      %v1355 = vsel %vm252, %v1321, 0
      %v1358 = vsel %vm252, %v1322, 0
      %v1361 = vsel %vm252, %v1323, 0
      %v1364 = vsel %vm252, %v1324, 0
      %v1367 = vsel %vm252, %v1325, 0
      %v1370 = vsel %vm252, %v1326, 0
      %v1373 = vsel %vm252, %v1327, 0
      %v1376 = vsel %vm252, %v1328, 0
      %v1379 = vsel %vm252, %v1329, 0
      %1381 = vmatprep.subr.mxu0 0.0
      %1382 = vmatpush1.msra.mxu0 0.0
      %1383 = vmatprep.subr.mxu0 0.0
      %1384 = vmatpush1.msra.mxu0 0.0
      %1385 = vmatprep.subr.mxu0 0.0
      %1386 = vmatpush1.msra.mxu0 0.0
      %1387 = vmatprep.subr.mxu0 0.0
      %1388 = vmatpush1.msra.mxu0 0.0
      %1389 = vmatprep.subr.mxu0 0.0
      %1390 = vmatpush1.msra.mxu0 0.0
      %1391 = vmatprep.subr.mxu0 0.0
      %1392 = vmatpush1.msra.mxu0 0.0
      %1393 = vmatprep.subr.mxu0 0.0
      %1394 = vmatpush1.msra.mxu0 0.0
      %1395 = vmatprep.subr.mxu0 0.0
      %1396 = vmatpush1.msra.mxu0 0.0
      %1397 = vmatprep.subr.mxu0 0.0
      %1398 = vmatpush1.msra.mxu0 0.0
      %1399 = vmatprep.subr.mxu0 0.0
      %1400 = vmatpush1.msra.mxu0 0.0
      %1401 = vmatprep.subr.mxu0 0.0
      %1402 = vmatpush1.msra.mxu0 0.0
      %1403 = vmatprep.subr.mxu0 0.0
      %1404 = vmatpush1.msra.mxu0 0.0
      %1405 = vmatprep.subr.mxu0 0.0
      %1406 = vmatpush1.msra.mxu0 0.0
      %1407 = vmatprep.subr.mxu0 0.0
      %1408 = vmatpush1.msra.mxu0 0.0
      %1409 = vmatprep.subr.mxu0 0.0
      %1410 = vmatpush1.msra.mxu0 %v1332
      %1411 = vmatprep.subr.mxu0 0.0
      %1412 = vmatpush1.msra.mxu0 %v1331
      %1413 = vmatprep.subr.mxu0 0.0
      %1414 = vmatpush2.msra.mxu0 0.0
      %1415 = vmatprep.subr.mxu0 0.0
      %1416 = vmatpush2.msra.mxu0 0.0
      %1417 = vmatprep.subr.mxu0 0.0
      %1418 = vmatpush2.msra.mxu0 0.0
      %1419 = vmatprep.subr.mxu0 0.0
      %1420 = vmatpush2.msra.mxu0 0.0
      %1421 = vmatprep.subr.mxu0 0.0
      %1422 = vmatpush2.msra.mxu0 0.0
      %1423 = vmatprep.subr.mxu0 0.0
      %1424 = vmatpush2.msra.mxu0 0.0
      %1425 = vmatprep.subr.mxu0 0.0
      %1426 = vmatpush2.msra.mxu0 0.0
      %1427 = vmatprep.subr.mxu0 0.0
      %1428 = vmatpush2.msra.mxu0 0.0
      %1429 = vmatprep.subr.mxu0 0.0
      %1430 = vmatpush2.msra.mxu0 0.0
      %1431 = vmatprep.subr.mxu0 0.0
      %1432 = vmatpush2.msra.mxu0 0.0
      %1433 = vmatprep.subr.mxu0 0.0
      %1434 = vmatpush2.msra.mxu0 0.0
      %1435 = vmatprep.subr.mxu0 0.0
      %1436 = vmatpush2.msra.mxu0 0.0
      %1437 = vmatprep.subr.mxu0 0.0
      %1438 = vmatpush2.msra.mxu0 0.0
      %1439 = vmatprep.subr.mxu0 0.0
      %1440 = vmatpush2.msra.mxu0 0.0
      %1441 = vmatprep.subr.mxu0 0.0
      %1442 = vmatpush2.msra.mxu0 0.0
      %1443 = vmatprep.subr.mxu0 0.0
      %1444 = vmatpush2.msra.mxu0 0.0
      %1445 = vmatprep.mubr.f32.mxu0 0.0
      %1446 = vmatmul.mubr.f32.gmra.mxu0 %v1334
      %v1447 = vpop.f32.mrf.mxu0
      %v1448 = vadd.f32 0.0, %v1447
      %v1449 = vpop.f32.mrf.mxu0
      %1450 = vmatprep.mubr.f32.mxu0 0.0
      %1451 = vmatmul.mubr.f32.gmra.mxu0 %v1337
      %v1452 = vpop.f32.mrf.mxu0
      %v1453 = vadd.f32 0.0, %v1452
      %v1454 = vpop.f32.mrf.mxu0
      %1455 = vmatprep.mubr.f32.mxu0 0.0
      %1456 = vmatmul.mubr.f32.gmra.mxu0 %v1340
      %v1457 = vpop.f32.mrf.mxu0
      %v1458 = vadd.f32 0.0, %v1457
      %v1459 = vpop.f32.mrf.mxu0
      %1460 = vmatprep.mubr.f32.mxu0 0.0
      %1461 = vmatmul.mubr.f32.gmra.mxu0 %v1343
      %v1462 = vpop.f32.mrf.mxu0
      %v1463 = vadd.f32 0.0, %v1462
      %v1464 = vpop.f32.mrf.mxu0
      %1465 = vmatprep.mubr.f32.mxu0 0.0
      %1466 = vmatmul.mubr.f32.gmra.mxu0 %v1346
      %v1467 = vpop.f32.mrf.mxu0
      %v1468 = vadd.f32 0.0, %v1467
      %v1469 = vpop.f32.mrf.mxu0
      %1470 = vmatprep.mubr.f32.mxu0 0.0
      %1471 = vmatmul.mubr.f32.gmra.mxu0 %v1349
      %v1472 = vpop.f32.mrf.mxu0
      %v1473 = vadd.f32 0.0, %v1472
      %v1474 = vpop.f32.mrf.mxu0
      %1475 = vmatprep.mubr.f32.mxu0 0.0
      %1476 = vmatmul.mubr.f32.gmra.mxu0 %v1352
      %v1477 = vpop.f32.mrf.mxu0
      %v1478 = vadd.f32 0.0, %v1477
      %v1479 = vpop.f32.mrf.mxu0
      %1480 = vmatprep.mubr.f32.mxu0 0.0
      %1481 = vmatmul.mubr.f32.gmra.mxu0 %v1355
      %v1482 = vpop.f32.mrf.mxu0
      %v1483 = vadd.f32 0.0, %v1482
      %v1484 = vpop.f32.mrf.mxu0
      %1485 = vmatprep.mubr.f32.mxu0 0.0
      %1486 = vmatmul.mubr.f32.gmra.mxu0 %v1358
      %v1487 = vpop.f32.mrf.mxu0
      %v1488 = vadd.f32 0.0, %v1487
      %v1489 = vpop.f32.mrf.mxu0
      %1490 = vmatprep.mubr.f32.mxu0 0.0
      %1491 = vmatmul.mubr.f32.gmra.mxu0 %v1361
      %v1492 = vpop.f32.mrf.mxu0
      %v1493 = vadd.f32 0.0, %v1492
      %v1494 = vpop.f32.mrf.mxu0
      %1495 = vmatprep.mubr.f32.mxu0 0.0
      %1496 = vmatmul.mubr.f32.gmra.mxu0 %v1364
      %v1497 = vpop.f32.mrf.mxu0
      %v1498 = vadd.f32 0.0, %v1497
      %v1499 = vpop.f32.mrf.mxu0
      %1500 = vmatprep.mubr.f32.mxu0 0.0
      %1501 = vmatmul.mubr.f32.gmra.mxu0 %v1367
      %v1502 = vpop.f32.mrf.mxu0
      %v1503 = vadd.f32 0.0, %v1502
      %v1504 = vpop.f32.mrf.mxu0
      %1505 = vmatprep.mubr.f32.mxu0 0.0
      %1506 = vmatmul.mubr.f32.gmra.mxu0 %v1370
      %v1507 = vpop.f32.mrf.mxu0
      %v1508 = vadd.f32 0.0, %v1507
      %v1509 = vpop.f32.mrf.mxu0
      %1510 = vmatprep.mubr.f32.mxu0 0.0
      %1511 = vmatmul.mubr.f32.gmra.mxu0 %v1373
      %v1512 = vpop.f32.mrf.mxu0
      %v1513 = vadd.f32 0.0, %v1512
      %v1514 = vpop.f32.mrf.mxu0
      %1515 = vmatprep.mubr.f32.mxu0 0.0
      %1516 = vmatmul.mubr.f32.gmra.mxu0 %v1376
      %v1517 = vpop.f32.mrf.mxu0
      %v1518 = vadd.f32 0.0, %v1517
      %v1519 = vpop.f32.mrf.mxu0
      %1520 = vmatprep.mubr.f32.mxu0 0.0
      %1521 = vmatmul.mubr.f32.gmra.mxu0 %v1379
      %v1522 = vpop.f32.mrf.mxu0
      %v1523 = vadd.f32 0.0, %v1522
      %v1524 = vpop.f32.mrf.mxu0
      %1525 = vdwg.mxu0
      %v1526 = vadd.f32 %v1298, %v1448
      %v1527 = vadd.f32 %v1299, %v1453
      %v1528 = vadd.f32 %v1300, %v1458
      %v1529 = vadd.f32 %v1301, %v1463
      %v1530 = vadd.f32 %v1302, %v1468
      %v1531 = vadd.f32 %v1303, %v1473
      %v1532 = vadd.f32 %v1304, %v1478
      %v1533 = vadd.f32 %v1305, %v1483
      %v1534 = vadd.f32 %v1306, %v1488
      %v1535 = vadd.f32 %v1307, %v1493
      %v1536 = vadd.f32 %v1308, %v1498
      %v1537 = vadd.f32 %v1309, %v1503
      %v1538 = vadd.f32 %v1310, %v1508
      %v1539 = vadd.f32 %v1311, %v1513
      %v1540 = vadd.f32 %v1312, %v1518
      %v1541 = vadd.f32 %v1313, %v1523
      %v1542 = vld [vmem:[#allocation2 + $0x12] sm:$0xff]
      %v1543 = vld [vmem:[#allocation2 + $0x1a] sm:$0xff]
      %v1544 = vld [vmem:[#allocation2 + $0x22] sm:$0xff]
      %v1545 = vld [vmem:[#allocation2 + $0x2a] sm:$0xff]
      %v1546 = vld [vmem:[#allocation2 + $0x32] sm:$0xff]
      %v1547 = vld [vmem:[#allocation2 + $0x3a] sm:$0xff]
      %v1548 = vld [vmem:[#allocation2 + $0x42] sm:$0xff]
      %v1549 = vld [vmem:[#allocation2 + $0x4a] sm:$0xff]
      %v1550 = vld [vmem:[#allocation2 + $0x52] sm:$0xff]
      %v1551 = vld [vmem:[#allocation2 + $0x5a] sm:$0xff]
      %v1552 = vld [vmem:[#allocation2 + $0x62] sm:$0xff]
      %v1553 = vld [vmem:[#allocation2 + $0x6a] sm:$0xff]
      %v1554 = vld [vmem:[#allocation2 + $0x72] sm:$0xff]
      %v1555 = vld [vmem:[#allocation2 + $0x7a] sm:$0xff]
      %v1556 = vld [vmem:[#allocation2 + $0x82] sm:$0xff]
      %v1557 = vld [vmem:[#allocation2 + $0x8a] sm:$0xff]
      %s1558 = scalar_lea.vmem %s3, 80
      %v1559 = vld [vmem:[%s1558] sm:$0xff]
      %v1560 = vld [vmem:[%s1558 + $0x8] sm:$0xff]
      %v1562 = vsel %vm252, %v1542, 0
      %v1565 = vsel %vm252, %v1543, 0
      %v1568 = vsel %vm252, %v1544, 0
      %v1571 = vsel %vm252, %v1545, 0
      %v1574 = vsel %vm252, %v1546, 0
      %v1577 = vsel %vm252, %v1547, 0
      %v1580 = vsel %vm252, %v1548, 0
      %v1583 = vsel %vm252, %v1549, 0
      %v1586 = vsel %vm252, %v1550, 0
      %v1589 = vsel %vm252, %v1551, 0
      %v1592 = vsel %vm252, %v1552, 0
      %v1595 = vsel %vm252, %v1553, 0
      %v1598 = vsel %vm252, %v1554, 0
      %v1601 = vsel %vm252, %v1555, 0
      %v1604 = vsel %vm252, %v1556, 0
      %v1607 = vsel %vm252, %v1557, 0
      %1609 = vmatprep.subr.mxu0 0.0
      %1610 = vmatpush1.msra.mxu0 0.0
      %1611 = vmatprep.subr.mxu0 0.0
      %1612 = vmatpush1.msra.mxu0 0.0
      %1613 = vmatprep.subr.mxu0 0.0
      %1614 = vmatpush1.msra.mxu0 0.0
      %1615 = vmatprep.subr.mxu0 0.0
      %1616 = vmatpush1.msra.mxu0 0.0
      %1617 = vmatprep.subr.mxu0 0.0
      %1618 = vmatpush1.msra.mxu0 0.0
      %1619 = vmatprep.subr.mxu0 0.0
      %1620 = vmatpush1.msra.mxu0 0.0
      %1621 = vmatprep.subr.mxu0 0.0
      %1622 = vmatpush1.msra.mxu0 0.0
      %1623 = vmatprep.subr.mxu0 0.0
      %1624 = vmatpush1.msra.mxu0 0.0
      %1625 = vmatprep.subr.mxu0 0.0
      %1626 = vmatpush1.msra.mxu0 0.0
      %1627 = vmatprep.subr.mxu0 0.0
      %1628 = vmatpush1.msra.mxu0 0.0
      %1629 = vmatprep.subr.mxu0 0.0
      %1630 = vmatpush1.msra.mxu0 0.0
      %1631 = vmatprep.subr.mxu0 0.0
      %1632 = vmatpush1.msra.mxu0 0.0
      %1633 = vmatprep.subr.mxu0 0.0
      %1634 = vmatpush1.msra.mxu0 0.0
      %1635 = vmatprep.subr.mxu0 0.0
      %1636 = vmatpush1.msra.mxu0 0.0
      %1637 = vmatprep.subr.mxu0 0.0
      %1638 = vmatpush1.msra.mxu0 %v1560
      %1639 = vmatprep.subr.mxu0 0.0
      %1640 = vmatpush1.msra.mxu0 %v1559
      %1641 = vmatprep.subr.mxu0 0.0
      %1642 = vmatpush2.msra.mxu0 0.0
      %1643 = vmatprep.subr.mxu0 0.0
      %1644 = vmatpush2.msra.mxu0 0.0
      %1645 = vmatprep.subr.mxu0 0.0
      %1646 = vmatpush2.msra.mxu0 0.0
      %1647 = vmatprep.subr.mxu0 0.0
      %1648 = vmatpush2.msra.mxu0 0.0
      %1649 = vmatprep.subr.mxu0 0.0
      %1650 = vmatpush2.msra.mxu0 0.0
      %1651 = vmatprep.subr.mxu0 0.0
      %1652 = vmatpush2.msra.mxu0 0.0
      %1653 = vmatprep.subr.mxu0 0.0
      %1654 = vmatpush2.msra.mxu0 0.0
      %1655 = vmatprep.subr.mxu0 0.0
      %1656 = vmatpush2.msra.mxu0 0.0
      %1657 = vmatprep.subr.mxu0 0.0
      %1658 = vmatpush2.msra.mxu0 0.0
      %1659 = vmatprep.subr.mxu0 0.0
      %1660 = vmatpush2.msra.mxu0 0.0
      %1661 = vmatprep.subr.mxu0 0.0
      %1662 = vmatpush2.msra.mxu0 0.0
      %1663 = vmatprep.subr.mxu0 0.0
      %1664 = vmatpush2.msra.mxu0 0.0
      %1665 = vmatprep.subr.mxu0 0.0
      %1666 = vmatpush2.msra.mxu0 0.0
      %1667 = vmatprep.subr.mxu0 0.0
      %1668 = vmatpush2.msra.mxu0 0.0
      %1669 = vmatprep.subr.mxu0 0.0
      %1670 = vmatpush2.msra.mxu0 0.0
      %1671 = vmatprep.subr.mxu0 0.0
      %1672 = vmatpush2.msra.mxu0 0.0
      %1673 = vmatprep.mubr.f32.mxu0 0.0
      %1674 = vmatmul.mubr.f32.gmra.mxu0 %v1562
      %v1675 = vpop.f32.mrf.mxu0
      %v1676 = vadd.f32 0.0, %v1675
      %v1677 = vpop.f32.mrf.mxu0
      %1678 = vmatprep.mubr.f32.mxu0 0.0
      %1679 = vmatmul.mubr.f32.gmra.mxu0 %v1565
      %v1680 = vpop.f32.mrf.mxu0
      %v1681 = vadd.f32 0.0, %v1680
      %v1682 = vpop.f32.mrf.mxu0
      %1683 = vmatprep.mubr.f32.mxu0 0.0
      %1684 = vmatmul.mubr.f32.gmra.mxu0 %v1568
      %v1685 = vpop.f32.mrf.mxu0
      %v1686 = vadd.f32 0.0, %v1685
      %v1687 = vpop.f32.mrf.mxu0
      %1688 = vmatprep.mubr.f32.mxu0 0.0
      %1689 = vmatmul.mubr.f32.gmra.mxu0 %v1571
      %v1690 = vpop.f32.mrf.mxu0
      %v1691 = vadd.f32 0.0, %v1690
      %v1692 = vpop.f32.mrf.mxu0
      %1693 = vmatprep.mubr.f32.mxu0 0.0
      %1694 = vmatmul.mubr.f32.gmra.mxu0 %v1574
      %v1695 = vpop.f32.mrf.mxu0
      %v1696 = vadd.f32 0.0, %v1695
      %v1697 = vpop.f32.mrf.mxu0
      %1698 = vmatprep.mubr.f32.mxu0 0.0
      %1699 = vmatmul.mubr.f32.gmra.mxu0 %v1577
      %v1700 = vpop.f32.mrf.mxu0
      %v1701 = vadd.f32 0.0, %v1700
      %v1702 = vpop.f32.mrf.mxu0
      %1703 = vmatprep.mubr.f32.mxu0 0.0
      %1704 = vmatmul.mubr.f32.gmra.mxu0 %v1580
      %v1705 = vpop.f32.mrf.mxu0
      %v1706 = vadd.f32 0.0, %v1705
      %v1707 = vpop.f32.mrf.mxu0
      %1708 = vmatprep.mubr.f32.mxu0 0.0
      %1709 = vmatmul.mubr.f32.gmra.mxu0 %v1583
      %v1710 = vpop.f32.mrf.mxu0
      %v1711 = vadd.f32 0.0, %v1710
      %v1712 = vpop.f32.mrf.mxu0
      %1713 = vmatprep.mubr.f32.mxu0 0.0
      %1714 = vmatmul.mubr.f32.gmra.mxu0 %v1586
      %v1715 = vpop.f32.mrf.mxu0
      %v1716 = vadd.f32 0.0, %v1715
      %v1717 = vpop.f32.mrf.mxu0
      %1718 = vmatprep.mubr.f32.mxu0 0.0
      %1719 = vmatmul.mubr.f32.gmra.mxu0 %v1589
      %v1720 = vpop.f32.mrf.mxu0
      %v1721 = vadd.f32 0.0, %v1720
      %v1722 = vpop.f32.mrf.mxu0
      %1723 = vmatprep.mubr.f32.mxu0 0.0
      %1724 = vmatmul.mubr.f32.gmra.mxu0 %v1592
      %v1725 = vpop.f32.mrf.mxu0
      %v1726 = vadd.f32 0.0, %v1725
      %v1727 = vpop.f32.mrf.mxu0
      %1728 = vmatprep.mubr.f32.mxu0 0.0
      %1729 = vmatmul.mubr.f32.gmra.mxu0 %v1595
      %v1730 = vpop.f32.mrf.mxu0
      %v1731 = vadd.f32 0.0, %v1730
      %v1732 = vpop.f32.mrf.mxu0
      %1733 = vmatprep.mubr.f32.mxu0 0.0
      %1734 = vmatmul.mubr.f32.gmra.mxu0 %v1598
      %v1735 = vpop.f32.mrf.mxu0
      %v1736 = vadd.f32 0.0, %v1735
      %v1737 = vpop.f32.mrf.mxu0
      %1738 = vmatprep.mubr.f32.mxu0 0.0
      %1739 = vmatmul.mubr.f32.gmra.mxu0 %v1601
      %v1740 = vpop.f32.mrf.mxu0
      %v1741 = vadd.f32 0.0, %v1740
      %v1742 = vpop.f32.mrf.mxu0
      %1743 = vmatprep.mubr.f32.mxu0 0.0
      %1744 = vmatmul.mubr.f32.gmra.mxu0 %v1604
      %v1745 = vpop.f32.mrf.mxu0
      %v1746 = vadd.f32 0.0, %v1745
      %v1747 = vpop.f32.mrf.mxu0
      %1748 = vmatprep.mubr.f32.mxu0 0.0
      %1749 = vmatmul.mubr.f32.gmra.mxu0 %v1607
      %v1750 = vpop.f32.mrf.mxu0
      %v1751 = vadd.f32 0.0, %v1750
      %v1752 = vpop.f32.mrf.mxu0
      %1753 = vdwg.mxu0
      %v1754 = vadd.f32 %v1526, %v1676
      %v1755 = vadd.f32 %v1527, %v1681
      %v1756 = vadd.f32 %v1528, %v1686
      %v1757 = vadd.f32 %v1529, %v1691
      %v1758 = vadd.f32 %v1530, %v1696
      %v1759 = vadd.f32 %v1531, %v1701
      %v1760 = vadd.f32 %v1532, %v1706
      %v1761 = vadd.f32 %v1533, %v1711
      %v1762 = vadd.f32 %v1534, %v1716
      %v1763 = vadd.f32 %v1535, %v1721
      %v1764 = vadd.f32 %v1536, %v1726
      %v1765 = vadd.f32 %v1537, %v1731
      %v1766 = vadd.f32 %v1538, %v1736
      %v1767 = vadd.f32 %v1539, %v1741
      %v1768 = vadd.f32 %v1540, %v1746
      %v1769 = vadd.f32 %v1541, %v1751
      %v1770 = vld [vmem:[#allocation2 + $0x20] sm:$0xff]
      %v1771 = vld [vmem:[#allocation2 + $0x28] sm:$0xff]
      %v1772 = vld [vmem:[#allocation2 + $0x30] sm:$0xff]
      %v1773 = vld [vmem:[#allocation2 + $0x38] sm:$0xff]
      %v1774 = vld [vmem:[#allocation2 + $0x40] sm:$0xff]
      %v1775 = vld [vmem:[#allocation2 + $0x48] sm:$0xff]
      %v1776 = vld [vmem:[#allocation2 + $0x50] sm:$0xff]
      %v1777 = vld [vmem:[#allocation2 + $0x58] sm:$0xff]
      %v1778 = vld [vmem:[#allocation2 + $0x60] sm:$0xff]
      %v1779 = vld [vmem:[#allocation2 + $0x68] sm:$0xff]
      %v1780 = vld [vmem:[#allocation2 + $0x70] sm:$0xff]
      %v1781 = vld [vmem:[#allocation2 + $0x78] sm:$0xff]
      %v1782 = vld [vmem:[#allocation2 + $0x80] sm:$0xff]
      %v1783 = vld [vmem:[#allocation2 + $0x88] sm:$0xff]
      %v1784 = vld [vmem:[#allocation2 + $0x90] sm:$0xff]
      %v1785 = vld [vmem:[#allocation2 + $0x98] sm:$0xff]
      %s1786 = scalar_lea.vmem %s3, 96
      %v1787 = vld [vmem:[%s1786] sm:$0xff]
      %v1788 = vld [vmem:[%s1786 + $0x8] sm:$0xff]
      %v1790 = vsel %vm252, %v1770, 0
      %v1793 = vsel %vm252, %v1771, 0
      %v1796 = vsel %vm252, %v1772, 0
      %v1799 = vsel %vm252, %v1773, 0
      %v1802 = vsel %vm252, %v1774, 0
      %v1805 = vsel %vm252, %v1775, 0
      %v1808 = vsel %vm252, %v1776, 0
      %v1811 = vsel %vm252, %v1777, 0
      %v1814 = vsel %vm252, %v1778, 0
      %v1817 = vsel %vm252, %v1779, 0
      %v1820 = vsel %vm252, %v1780, 0
      %v1823 = vsel %vm252, %v1781, 0
      %v1826 = vsel %vm252, %v1782, 0
      %v1829 = vsel %vm252, %v1783, 0
      %v1832 = vsel %vm252, %v1784, 0
      %v1835 = vsel %vm252, %v1785, 0
      %1837 = vmatprep.subr.mxu0 0.0
      %1838 = vmatpush1.msra.mxu0 0.0
      %1839 = vmatprep.subr.mxu0 0.0
      %1840 = vmatpush1.msra.mxu0 0.0
      %1841 = vmatprep.subr.mxu0 0.0
      %1842 = vmatpush1.msra.mxu0 0.0
      %1843 = vmatprep.subr.mxu0 0.0
      %1844 = vmatpush1.msra.mxu0 0.0
      %1845 = vmatprep.subr.mxu0 0.0
      %1846 = vmatpush1.msra.mxu0 0.0
      %1847 = vmatprep.subr.mxu0 0.0
      %1848 = vmatpush1.msra.mxu0 0.0
      %1849 = vmatprep.subr.mxu0 0.0
      %1850 = vmatpush1.msra.mxu0 0.0
      %1851 = vmatprep.subr.mxu0 0.0
      %1852 = vmatpush1.msra.mxu0 0.0
      %1853 = vmatprep.subr.mxu0 0.0
      %1854 = vmatpush1.msra.mxu0 0.0
      %1855 = vmatprep.subr.mxu0 0.0
      %1856 = vmatpush1.msra.mxu0 0.0
      %1857 = vmatprep.subr.mxu0 0.0
      %1858 = vmatpush1.msra.mxu0 0.0
      %1859 = vmatprep.subr.mxu0 0.0
      %1860 = vmatpush1.msra.mxu0 0.0
      %1861 = vmatprep.subr.mxu0 0.0
      %1862 = vmatpush1.msra.mxu0 0.0
      %1863 = vmatprep.subr.mxu0 0.0
      %1864 = vmatpush1.msra.mxu0 0.0
      %1865 = vmatprep.subr.mxu0 0.0
      %1866 = vmatpush1.msra.mxu0 %v1788
      %1867 = vmatprep.subr.mxu0 0.0
      %1868 = vmatpush1.msra.mxu0 %v1787
      %1869 = vmatprep.subr.mxu0 0.0
      %1870 = vmatpush2.msra.mxu0 0.0
      %1871 = vmatprep.subr.mxu0 0.0
      %1872 = vmatpush2.msra.mxu0 0.0
      %1873 = vmatprep.subr.mxu0 0.0
      %1874 = vmatpush2.msra.mxu0 0.0
      %1875 = vmatprep.subr.mxu0 0.0
      %1876 = vmatpush2.msra.mxu0 0.0
      %1877 = vmatprep.subr.mxu0 0.0
      %1878 = vmatpush2.msra.mxu0 0.0
      %1879 = vmatprep.subr.mxu0 0.0
      %1880 = vmatpush2.msra.mxu0 0.0
      %1881 = vmatprep.subr.mxu0 0.0
      %1882 = vmatpush2.msra.mxu0 0.0
      %1883 = vmatprep.subr.mxu0 0.0
      %1884 = vmatpush2.msra.mxu0 0.0
      %1885 = vmatprep.subr.mxu0 0.0
      %1886 = vmatpush2.msra.mxu0 0.0
      %1887 = vmatprep.subr.mxu0 0.0
      %1888 = vmatpush2.msra.mxu0 0.0
      %1889 = vmatprep.subr.mxu0 0.0
      %1890 = vmatpush2.msra.mxu0 0.0
      %1891 = vmatprep.subr.mxu0 0.0
      %1892 = vmatpush2.msra.mxu0 0.0
      %1893 = vmatprep.subr.mxu0 0.0
      %1894 = vmatpush2.msra.mxu0 0.0
      %1895 = vmatprep.subr.mxu0 0.0
      %1896 = vmatpush2.msra.mxu0 0.0
      %1897 = vmatprep.subr.mxu0 0.0
      %1898 = vmatpush2.msra.mxu0 0.0
      %1899 = vmatprep.subr.mxu0 0.0
      %1900 = vmatpush2.msra.mxu0 0.0
      %1901 = vmatprep.mubr.f32.mxu0 0.0
      %1902 = vmatmul.mubr.f32.gmra.mxu0 %v1790
      %v1903 = vpop.f32.mrf.mxu0
      %v1904 = vadd.f32 0.0, %v1903
      %v1905 = vpop.f32.mrf.mxu0
      %1906 = vmatprep.mubr.f32.mxu0 0.0
      %1907 = vmatmul.mubr.f32.gmra.mxu0 %v1793
      %v1908 = vpop.f32.mrf.mxu0
      %v1909 = vadd.f32 0.0, %v1908
      %v1910 = vpop.f32.mrf.mxu0
      %1911 = vmatprep.mubr.f32.mxu0 0.0
      %1912 = vmatmul.mubr.f32.gmra.mxu0 %v1796
      %v1913 = vpop.f32.mrf.mxu0
      %v1914 = vadd.f32 0.0, %v1913
      %v1915 = vpop.f32.mrf.mxu0
      %1916 = vmatprep.mubr.f32.mxu0 0.0
      %1917 = vmatmul.mubr.f32.gmra.mxu0 %v1799
      %v1918 = vpop.f32.mrf.mxu0
      %v1919 = vadd.f32 0.0, %v1918
      %v1920 = vpop.f32.mrf.mxu0
      %1921 = vmatprep.mubr.f32.mxu0 0.0
      %1922 = vmatmul.mubr.f32.gmra.mxu0 %v1802
      %v1923 = vpop.f32.mrf.mxu0
      %v1924 = vadd.f32 0.0, %v1923
      %v1925 = vpop.f32.mrf.mxu0
      %1926 = vmatprep.mubr.f32.mxu0 0.0
      %1927 = vmatmul.mubr.f32.gmra.mxu0 %v1805
      %v1928 = vpop.f32.mrf.mxu0
      %v1929 = vadd.f32 0.0, %v1928
      %v1930 = vpop.f32.mrf.mxu0
      %1931 = vmatprep.mubr.f32.mxu0 0.0
      %1932 = vmatmul.mubr.f32.gmra.mxu0 %v1808
      %v1933 = vpop.f32.mrf.mxu0
      %v1934 = vadd.f32 0.0, %v1933
      %v1935 = vpop.f32.mrf.mxu0
      %1936 = vmatprep.mubr.f32.mxu0 0.0
      %1937 = vmatmul.mubr.f32.gmra.mxu0 %v1811
      %v1938 = vpop.f32.mrf.mxu0
      %v1939 = vadd.f32 0.0, %v1938
      %v1940 = vpop.f32.mrf.mxu0
      %1941 = vmatprep.mubr.f32.mxu0 0.0
      %1942 = vmatmul.mubr.f32.gmra.mxu0 %v1814
      %v1943 = vpop.f32.mrf.mxu0
      %v1944 = vadd.f32 0.0, %v1943
      %v1945 = vpop.f32.mrf.mxu0
      %1946 = vmatprep.mubr.f32.mxu0 0.0
      %1947 = vmatmul.mubr.f32.gmra.mxu0 %v1817
      %v1948 = vpop.f32.mrf.mxu0
      %v1949 = vadd.f32 0.0, %v1948
      %v1950 = vpop.f32.mrf.mxu0
      %1951 = vmatprep.mubr.f32.mxu0 0.0
      %1952 = vmatmul.mubr.f32.gmra.mxu0 %v1820
      %v1953 = vpop.f32.mrf.mxu0
      %v1954 = vadd.f32 0.0, %v1953
      %v1955 = vpop.f32.mrf.mxu0
      %1956 = vmatprep.mubr.f32.mxu0 0.0
      %1957 = vmatmul.mubr.f32.gmra.mxu0 %v1823
      %v1958 = vpop.f32.mrf.mxu0
      %v1959 = vadd.f32 0.0, %v1958
      %v1960 = vpop.f32.mrf.mxu0
      %1961 = vmatprep.mubr.f32.mxu0 0.0
      %1962 = vmatmul.mubr.f32.gmra.mxu0 %v1826
      %v1963 = vpop.f32.mrf.mxu0
      %v1964 = vadd.f32 0.0, %v1963
      %v1965 = vpop.f32.mrf.mxu0
      %1966 = vmatprep.mubr.f32.mxu0 0.0
      %1967 = vmatmul.mubr.f32.gmra.mxu0 %v1829
      %v1968 = vpop.f32.mrf.mxu0
      %v1969 = vadd.f32 0.0, %v1968
      %v1970 = vpop.f32.mrf.mxu0
      %1971 = vmatprep.mubr.f32.mxu0 0.0
      %1972 = vmatmul.mubr.f32.gmra.mxu0 %v1832
      %v1973 = vpop.f32.mrf.mxu0
      %v1974 = vadd.f32 0.0, %v1973
      %v1975 = vpop.f32.mrf.mxu0
      %1976 = vmatprep.mubr.f32.mxu0 0.0
      %1977 = vmatmul.mubr.f32.gmra.mxu0 %v1835
      %v1978 = vpop.f32.mrf.mxu0
      %v1979 = vadd.f32 0.0, %v1978
      %v1980 = vpop.f32.mrf.mxu0
      %1981 = vdwg.mxu0
      %v1982 = vadd.f32 %v1754, %v1904
      %v1983 = vadd.f32 %v1755, %v1909
      %v1984 = vadd.f32 %v1756, %v1914
      %v1985 = vadd.f32 %v1757, %v1919
      %v1986 = vadd.f32 %v1758, %v1924
      %v1987 = vadd.f32 %v1759, %v1929
      %v1988 = vadd.f32 %v1760, %v1934
      %v1989 = vadd.f32 %v1761, %v1939
      %v1990 = vadd.f32 %v1762, %v1944
      %v1991 = vadd.f32 %v1763, %v1949
      %v1992 = vadd.f32 %v1764, %v1954
      %v1993 = vadd.f32 %v1765, %v1959
      %v1994 = vadd.f32 %v1766, %v1964
      %v1995 = vadd.f32 %v1767, %v1969
      %v1996 = vadd.f32 %v1768, %v1974
      %v1997 = vadd.f32 %v1769, %v1979
      %v1998 = vld [vmem:[#allocation2 + $0x21] sm:$0xff]
      %v1999 = vld [vmem:[#allocation2 + $0x29] sm:$0xff]
      %v2000 = vld [vmem:[#allocation2 + $0x31] sm:$0xff]
      %v2001 = vld [vmem:[#allocation2 + $0x39] sm:$0xff]
      %v2002 = vld [vmem:[#allocation2 + $0x41] sm:$0xff]
      %v2003 = vld [vmem:[#allocation2 + $0x49] sm:$0xff]
      %v2004 = vld [vmem:[#allocation2 + $0x51] sm:$0xff]
      %v2005 = vld [vmem:[#allocation2 + $0x59] sm:$0xff]
      %v2006 = vld [vmem:[#allocation2 + $0x61] sm:$0xff]
      %v2007 = vld [vmem:[#allocation2 + $0x69] sm:$0xff]
      %v2008 = vld [vmem:[#allocation2 + $0x71] sm:$0xff]
      %v2009 = vld [vmem:[#allocation2 + $0x79] sm:$0xff]
      %v2010 = vld [vmem:[#allocation2 + $0x81] sm:$0xff]
      %v2011 = vld [vmem:[#allocation2 + $0x89] sm:$0xff]
      %v2012 = vld [vmem:[#allocation2 + $0x91] sm:$0xff]
      %v2013 = vld [vmem:[#allocation2 + $0x99] sm:$0xff]
      %s2014 = scalar_lea.vmem %s3, 112
      %v2015 = vld [vmem:[%s2014] sm:$0xff]
      %v2016 = vld [vmem:[%s2014 + $0x8] sm:$0xff]
      %v2018 = vsel %vm252, %v1998, 0
      %v2021 = vsel %vm252, %v1999, 0
      %v2024 = vsel %vm252, %v2000, 0
      %v2027 = vsel %vm252, %v2001, 0
      %v2030 = vsel %vm252, %v2002, 0
      %v2033 = vsel %vm252, %v2003, 0
      %v2036 = vsel %vm252, %v2004, 0
      %v2039 = vsel %vm252, %v2005, 0
      %v2042 = vsel %vm252, %v2006, 0
      %v2045 = vsel %vm252, %v2007, 0
      %v2048 = vsel %vm252, %v2008, 0
      %v2051 = vsel %vm252, %v2009, 0
      %v2054 = vsel %vm252, %v2010, 0
      %v2057 = vsel %vm252, %v2011, 0
      %v2060 = vsel %vm252, %v2012, 0
      %v2063 = vsel %vm252, %v2013, 0
      %2065 = vmatprep.subr.mxu0 0.0
      %2066 = vmatpush1.msra.mxu0 0.0
      %2067 = vmatprep.subr.mxu0 0.0
      %2068 = vmatpush1.msra.mxu0 0.0
      %2069 = vmatprep.subr.mxu0 0.0
      %2070 = vmatpush1.msra.mxu0 0.0
      %2071 = vmatprep.subr.mxu0 0.0
      %2072 = vmatpush1.msra.mxu0 0.0
      %2073 = vmatprep.subr.mxu0 0.0
      %2074 = vmatpush1.msra.mxu0 0.0
      %2075 = vmatprep.subr.mxu0 0.0
      %2076 = vmatpush1.msra.mxu0 0.0
      %2077 = vmatprep.subr.mxu0 0.0
      %2078 = vmatpush1.msra.mxu0 0.0
      %2079 = vmatprep.subr.mxu0 0.0
      %2080 = vmatpush1.msra.mxu0 0.0
      %2081 = vmatprep.subr.mxu0 0.0
      %2082 = vmatpush1.msra.mxu0 0.0
      %2083 = vmatprep.subr.mxu0 0.0
      %2084 = vmatpush1.msra.mxu0 0.0
      %2085 = vmatprep.subr.mxu0 0.0
      %2086 = vmatpush1.msra.mxu0 0.0
      %2087 = vmatprep.subr.mxu0 0.0
      %2088 = vmatpush1.msra.mxu0 0.0
      %2089 = vmatprep.subr.mxu0 0.0
      %2090 = vmatpush1.msra.mxu0 0.0
      %2091 = vmatprep.subr.mxu0 0.0
      %2092 = vmatpush1.msra.mxu0 0.0
      %2093 = vmatprep.subr.mxu0 0.0
      %2094 = vmatpush1.msra.mxu0 %v2016
      %2095 = vmatprep.subr.mxu0 0.0
      %2096 = vmatpush1.msra.mxu0 %v2015
      %2097 = vmatprep.subr.mxu0 0.0
      %2098 = vmatpush2.msra.mxu0 0.0
      %2099 = vmatprep.subr.mxu0 0.0
      %2100 = vmatpush2.msra.mxu0 0.0
      %2101 = vmatprep.subr.mxu0 0.0
      %2102 = vmatpush2.msra.mxu0 0.0
      %2103 = vmatprep.subr.mxu0 0.0
      %2104 = vmatpush2.msra.mxu0 0.0
      %2105 = vmatprep.subr.mxu0 0.0
      %2106 = vmatpush2.msra.mxu0 0.0
      %2107 = vmatprep.subr.mxu0 0.0
      %2108 = vmatpush2.msra.mxu0 0.0
      %2109 = vmatprep.subr.mxu0 0.0
      %2110 = vmatpush2.msra.mxu0 0.0
      %2111 = vmatprep.subr.mxu0 0.0
      %2112 = vmatpush2.msra.mxu0 0.0
      %2113 = vmatprep.subr.mxu0 0.0
      %2114 = vmatpush2.msra.mxu0 0.0
      %2115 = vmatprep.subr.mxu0 0.0
      %2116 = vmatpush2.msra.mxu0 0.0
      %2117 = vmatprep.subr.mxu0 0.0
      %2118 = vmatpush2.msra.mxu0 0.0
      %2119 = vmatprep.subr.mxu0 0.0
      %2120 = vmatpush2.msra.mxu0 0.0
      %2121 = vmatprep.subr.mxu0 0.0
      %2122 = vmatpush2.msra.mxu0 0.0
      %2123 = vmatprep.subr.mxu0 0.0
      %2124 = vmatpush2.msra.mxu0 0.0
      %2125 = vmatprep.subr.mxu0 0.0
      %2126 = vmatpush2.msra.mxu0 0.0
      %2127 = vmatprep.subr.mxu0 0.0
      %2128 = vmatpush2.msra.mxu0 0.0
      %2129 = vmatprep.mubr.f32.mxu0 0.0
      %2130 = vmatmul.mubr.f32.gmra.mxu0 %v2018
      %v2131 = vpop.f32.mrf.mxu0
      %v2132 = vadd.f32 0.0, %v2131
      %v2133 = vpop.f32.mrf.mxu0
      %2134 = vmatprep.mubr.f32.mxu0 0.0
      %2135 = vmatmul.mubr.f32.gmra.mxu0 %v2021
      %v2136 = vpop.f32.mrf.mxu0
      %v2137 = vadd.f32 0.0, %v2136
      %v2138 = vpop.f32.mrf.mxu0
      %2139 = vmatprep.mubr.f32.mxu0 0.0
      %2140 = vmatmul.mubr.f32.gmra.mxu0 %v2024
      %v2141 = vpop.f32.mrf.mxu0
      %v2142 = vadd.f32 0.0, %v2141
      %v2143 = vpop.f32.mrf.mxu0
      %2144 = vmatprep.mubr.f32.mxu0 0.0
      %2145 = vmatmul.mubr.f32.gmra.mxu0 %v2027
      %v2146 = vpop.f32.mrf.mxu0
      %v2147 = vadd.f32 0.0, %v2146
      %v2148 = vpop.f32.mrf.mxu0
      %2149 = vmatprep.mubr.f32.mxu0 0.0
      %2150 = vmatmul.mubr.f32.gmra.mxu0 %v2030
      %v2151 = vpop.f32.mrf.mxu0
      %v2152 = vadd.f32 0.0, %v2151
      %v2153 = vpop.f32.mrf.mxu0
      %2154 = vmatprep.mubr.f32.mxu0 0.0
      %2155 = vmatmul.mubr.f32.gmra.mxu0 %v2033
      %v2156 = vpop.f32.mrf.mxu0
      %v2157 = vadd.f32 0.0, %v2156
      %v2158 = vpop.f32.mrf.mxu0
      %2159 = vmatprep.mubr.f32.mxu0 0.0
      %2160 = vmatmul.mubr.f32.gmra.mxu0 %v2036
      %v2161 = vpop.f32.mrf.mxu0
      %v2162 = vadd.f32 0.0, %v2161
      %v2163 = vpop.f32.mrf.mxu0
      %2164 = vmatprep.mubr.f32.mxu0 0.0
      %2165 = vmatmul.mubr.f32.gmra.mxu0 %v2039
      %v2166 = vpop.f32.mrf.mxu0
      %v2167 = vadd.f32 0.0, %v2166
      %v2168 = vpop.f32.mrf.mxu0
      %2169 = vmatprep.mubr.f32.mxu0 0.0
      %2170 = vmatmul.mubr.f32.gmra.mxu0 %v2042
      %v2171 = vpop.f32.mrf.mxu0
      %v2172 = vadd.f32 0.0, %v2171
      %v2173 = vpop.f32.mrf.mxu0
      %2174 = vmatprep.mubr.f32.mxu0 0.0
      %2175 = vmatmul.mubr.f32.gmra.mxu0 %v2045
      %v2176 = vpop.f32.mrf.mxu0
      %v2177 = vadd.f32 0.0, %v2176
      %v2178 = vpop.f32.mrf.mxu0
      %2179 = vmatprep.mubr.f32.mxu0 0.0
      %2180 = vmatmul.mubr.f32.gmra.mxu0 %v2048
      %v2181 = vpop.f32.mrf.mxu0
      %v2182 = vadd.f32 0.0, %v2181
      %v2183 = vpop.f32.mrf.mxu0
      %2184 = vmatprep.mubr.f32.mxu0 0.0
      %2185 = vmatmul.mubr.f32.gmra.mxu0 %v2051
      %v2186 = vpop.f32.mrf.mxu0
      %v2187 = vadd.f32 0.0, %v2186
      %v2188 = vpop.f32.mrf.mxu0
      %2189 = vmatprep.mubr.f32.mxu0 0.0
      %2190 = vmatmul.mubr.f32.gmra.mxu0 %v2054
      %v2191 = vpop.f32.mrf.mxu0
      %v2192 = vadd.f32 0.0, %v2191
      %v2193 = vpop.f32.mrf.mxu0
      %2194 = vmatprep.mubr.f32.mxu0 0.0
      %2195 = vmatmul.mubr.f32.gmra.mxu0 %v2057
      %v2196 = vpop.f32.mrf.mxu0
      %v2197 = vadd.f32 0.0, %v2196
      %v2198 = vpop.f32.mrf.mxu0
      %2199 = vmatprep.mubr.f32.mxu0 0.0
      %2200 = vmatmul.mubr.f32.gmra.mxu0 %v2060
      %v2201 = vpop.f32.mrf.mxu0
      %v2202 = vadd.f32 0.0, %v2201
      %v2203 = vpop.f32.mrf.mxu0
      %2204 = vmatprep.mubr.f32.mxu0 0.0
      %2205 = vmatmul.mubr.f32.gmra.mxu0 %v2063
      %v2206 = vpop.f32.mrf.mxu0
      %v2207 = vadd.f32 0.0, %v2206
      %v2208 = vpop.f32.mrf.mxu0
      %2209 = vdwg.mxu0
      %v2210 = vadd.f32 %v1982, %v2132
      %v2211 = vadd.f32 %v1983, %v2137
      %v2212 = vadd.f32 %v1984, %v2142
      %v2213 = vadd.f32 %v1985, %v2147
      %v2214 = vadd.f32 %v1986, %v2152
      %v2215 = vadd.f32 %v1987, %v2157
      %v2216 = vadd.f32 %v1988, %v2162
      %v2217 = vadd.f32 %v1989, %v2167
      %v2218 = vadd.f32 %v1990, %v2172
      %v2219 = vadd.f32 %v1991, %v2177
      %v2220 = vadd.f32 %v1992, %v2182
      %v2221 = vadd.f32 %v1993, %v2187
      %v2222 = vadd.f32 %v1994, %v2192
      %v2223 = vadd.f32 %v1995, %v2197
      %v2224 = vadd.f32 %v1996, %v2202
      %v2225 = vadd.f32 %v1997, %v2207
      %v2226 = vld [vmem:[#allocation2 + $0x22] sm:$0xff]
      %v2227 = vld [vmem:[#allocation2 + $0x2a] sm:$0xff]
      %v2228 = vld [vmem:[#allocation2 + $0x32] sm:$0xff]
      %v2229 = vld [vmem:[#allocation2 + $0x3a] sm:$0xff]
      %v2230 = vld [vmem:[#allocation2 + $0x42] sm:$0xff]
      %v2231 = vld [vmem:[#allocation2 + $0x4a] sm:$0xff]
      %v2232 = vld [vmem:[#allocation2 + $0x52] sm:$0xff]
      %v2233 = vld [vmem:[#allocation2 + $0x5a] sm:$0xff]
      %v2234 = vld [vmem:[#allocation2 + $0x62] sm:$0xff]
      %v2235 = vld [vmem:[#allocation2 + $0x6a] sm:$0xff]
      %v2236 = vld [vmem:[#allocation2 + $0x72] sm:$0xff]
      %v2237 = vld [vmem:[#allocation2 + $0x7a] sm:$0xff]
      %v2238 = vld [vmem:[#allocation2 + $0x82] sm:$0xff]
      %v2239 = vld [vmem:[#allocation2 + $0x8a] sm:$0xff]
      %v2240 = vld [vmem:[#allocation2 + $0x92] sm:$0xff]
      %v2241 = vld [vmem:[#allocation2 + $0x9a] sm:$0xff]
      %s2242 = scalar_lea.vmem %s3, 128
      %v2243 = vld [vmem:[%s2242] sm:$0xff]
      %v2244 = vld [vmem:[%s2242 + $0x8] sm:$0xff]
      %v2246 = vsel %vm252, %v2226, 0
      %v2249 = vsel %vm252, %v2227, 0
      %v2252 = vsel %vm252, %v2228, 0
      %v2255 = vsel %vm252, %v2229, 0
      %v2258 = vsel %vm252, %v2230, 0
      %v2261 = vsel %vm252, %v2231, 0
      %v2264 = vsel %vm252, %v2232, 0
      %v2267 = vsel %vm252, %v2233, 0
      %v2270 = vsel %vm252, %v2234, 0
      %v2273 = vsel %vm252, %v2235, 0
      %v2276 = vsel %vm252, %v2236, 0
      %v2279 = vsel %vm252, %v2237, 0
      %v2282 = vsel %vm252, %v2238, 0
      %v2285 = vsel %vm252, %v2239, 0
      %v2288 = vsel %vm252, %v2240, 0
      %v2291 = vsel %vm252, %v2241, 0
      %2293 = vmatprep.subr.mxu0 0.0
      %2294 = vmatpush1.msra.mxu0 0.0
      %2295 = vmatprep.subr.mxu0 0.0
      %2296 = vmatpush1.msra.mxu0 0.0
      %2297 = vmatprep.subr.mxu0 0.0
      %2298 = vmatpush1.msra.mxu0 0.0
      %2299 = vmatprep.subr.mxu0 0.0
      %2300 = vmatpush1.msra.mxu0 0.0
      %2301 = vmatprep.subr.mxu0 0.0
      %2302 = vmatpush1.msra.mxu0 0.0
      %2303 = vmatprep.subr.mxu0 0.0
      %2304 = vmatpush1.msra.mxu0 0.0
      %2305 = vmatprep.subr.mxu0 0.0
      %2306 = vmatpush1.msra.mxu0 0.0
      %2307 = vmatprep.subr.mxu0 0.0
      %2308 = vmatpush1.msra.mxu0 0.0
      %2309 = vmatprep.subr.mxu0 0.0
      %2310 = vmatpush1.msra.mxu0 0.0
      %2311 = vmatprep.subr.mxu0 0.0
      %2312 = vmatpush1.msra.mxu0 0.0
      %2313 = vmatprep.subr.mxu0 0.0
      %2314 = vmatpush1.msra.mxu0 0.0
      %2315 = vmatprep.subr.mxu0 0.0
      %2316 = vmatpush1.msra.mxu0 0.0
      %2317 = vmatprep.subr.mxu0 0.0
      %2318 = vmatpush1.msra.mxu0 0.0
      %2319 = vmatprep.subr.mxu0 0.0
      %2320 = vmatpush1.msra.mxu0 0.0
      %2321 = vmatprep.subr.mxu0 0.0
      %2322 = vmatpush1.msra.mxu0 %v2244
      %2323 = vmatprep.subr.mxu0 0.0
      %2324 = vmatpush1.msra.mxu0 %v2243
      %2325 = vmatprep.subr.mxu0 0.0
      %2326 = vmatpush2.msra.mxu0 0.0
      %2327 = vmatprep.subr.mxu0 0.0
      %2328 = vmatpush2.msra.mxu0 0.0
      %2329 = vmatprep.subr.mxu0 0.0
      %2330 = vmatpush2.msra.mxu0 0.0
      %2331 = vmatprep.subr.mxu0 0.0
      %2332 = vmatpush2.msra.mxu0 0.0
      %2333 = vmatprep.subr.mxu0 0.0
      %2334 = vmatpush2.msra.mxu0 0.0
      %2335 = vmatprep.subr.mxu0 0.0
      %2336 = vmatpush2.msra.mxu0 0.0
      %2337 = vmatprep.subr.mxu0 0.0
      %2338 = vmatpush2.msra.mxu0 0.0
      %2339 = vmatprep.subr.mxu0 0.0
      %2340 = vmatpush2.msra.mxu0 0.0
      %2341 = vmatprep.subr.mxu0 0.0
      %2342 = vmatpush2.msra.mxu0 0.0
      %2343 = vmatprep.subr.mxu0 0.0
      %2344 = vmatpush2.msra.mxu0 0.0
      %2345 = vmatprep.subr.mxu0 0.0
      %2346 = vmatpush2.msra.mxu0 0.0
      %2347 = vmatprep.subr.mxu0 0.0
      %2348 = vmatpush2.msra.mxu0 0.0
      %2349 = vmatprep.subr.mxu0 0.0
      %2350 = vmatpush2.msra.mxu0 0.0
      %2351 = vmatprep.subr.mxu0 0.0
      %2352 = vmatpush2.msra.mxu0 0.0
      %2353 = vmatprep.subr.mxu0 0.0
      %2354 = vmatpush2.msra.mxu0 0.0
      %2355 = vmatprep.subr.mxu0 0.0
      %2356 = vmatpush2.msra.mxu0 0.0
      %2357 = vmatprep.mubr.f32.mxu0 0.0
      %2358 = vmatmul.mubr.f32.gmra.mxu0 %v2246
      %v2359 = vpop.f32.mrf.mxu0
      %v2360 = vadd.f32 0.0, %v2359
      %v2361 = vpop.f32.mrf.mxu0
      %2362 = vmatprep.mubr.f32.mxu0 0.0
      %2363 = vmatmul.mubr.f32.gmra.mxu0 %v2249
      %v2364 = vpop.f32.mrf.mxu0
      %v2365 = vadd.f32 0.0, %v2364
      %v2366 = vpop.f32.mrf.mxu0
      %2367 = vmatprep.mubr.f32.mxu0 0.0
      %2368 = vmatmul.mubr.f32.gmra.mxu0 %v2252
      %v2369 = vpop.f32.mrf.mxu0
      %v2370 = vadd.f32 0.0, %v2369
      %v2371 = vpop.f32.mrf.mxu0
      %2372 = vmatprep.mubr.f32.mxu0 0.0
      %2373 = vmatmul.mubr.f32.gmra.mxu0 %v2255
      %v2374 = vpop.f32.mrf.mxu0
      %v2375 = vadd.f32 0.0, %v2374
      %v2376 = vpop.f32.mrf.mxu0
      %2377 = vmatprep.mubr.f32.mxu0 0.0
      %2378 = vmatmul.mubr.f32.gmra.mxu0 %v2258
      %v2379 = vpop.f32.mrf.mxu0
      %v2380 = vadd.f32 0.0, %v2379
      %v2381 = vpop.f32.mrf.mxu0
      %2382 = vmatprep.mubr.f32.mxu0 0.0
      %2383 = vmatmul.mubr.f32.gmra.mxu0 %v2261
      %v2384 = vpop.f32.mrf.mxu0
      %v2385 = vadd.f32 0.0, %v2384
      %v2386 = vpop.f32.mrf.mxu0
      %2387 = vmatprep.mubr.f32.mxu0 0.0
      %2388 = vmatmul.mubr.f32.gmra.mxu0 %v2264
      %v2389 = vpop.f32.mrf.mxu0
      %v2390 = vadd.f32 0.0, %v2389
      %v2391 = vpop.f32.mrf.mxu0
      %2392 = vmatprep.mubr.f32.mxu0 0.0
      %2393 = vmatmul.mubr.f32.gmra.mxu0 %v2267
      %v2394 = vpop.f32.mrf.mxu0
      %v2395 = vadd.f32 0.0, %v2394
      %v2396 = vpop.f32.mrf.mxu0
      %2397 = vmatprep.mubr.f32.mxu0 0.0
      %2398 = vmatmul.mubr.f32.gmra.mxu0 %v2270
      %v2399 = vpop.f32.mrf.mxu0
      %v2400 = vadd.f32 0.0, %v2399
      %v2401 = vpop.f32.mrf.mxu0
      %2402 = vmatprep.mubr.f32.mxu0 0.0
      %2403 = vmatmul.mubr.f32.gmra.mxu0 %v2273
      %v2404 = vpop.f32.mrf.mxu0
      %v2405 = vadd.f32 0.0, %v2404
      %v2406 = vpop.f32.mrf.mxu0
      %2407 = vmatprep.mubr.f32.mxu0 0.0
      %2408 = vmatmul.mubr.f32.gmra.mxu0 %v2276
      %v2409 = vpop.f32.mrf.mxu0
      %v2410 = vadd.f32 0.0, %v2409
      %v2411 = vpop.f32.mrf.mxu0
      %2412 = vmatprep.mubr.f32.mxu0 0.0
      %2413 = vmatmul.mubr.f32.gmra.mxu0 %v2279
      %v2414 = vpop.f32.mrf.mxu0
      %v2415 = vadd.f32 0.0, %v2414
      %v2416 = vpop.f32.mrf.mxu0
      %2417 = vmatprep.mubr.f32.mxu0 0.0
      %2418 = vmatmul.mubr.f32.gmra.mxu0 %v2282
      %v2419 = vpop.f32.mrf.mxu0
      %v2420 = vadd.f32 0.0, %v2419
      %v2421 = vpop.f32.mrf.mxu0
      %2422 = vmatprep.mubr.f32.mxu0 0.0
      %2423 = vmatmul.mubr.f32.gmra.mxu0 %v2285
      %v2424 = vpop.f32.mrf.mxu0
      %v2425 = vadd.f32 0.0, %v2424
      %v2426 = vpop.f32.mrf.mxu0
      %2427 = vmatprep.mubr.f32.mxu0 0.0
      %2428 = vmatmul.mubr.f32.gmra.mxu0 %v2288
      %v2429 = vpop.f32.mrf.mxu0
      %v2430 = vadd.f32 0.0, %v2429
      %v2431 = vpop.f32.mrf.mxu0
      %2432 = vmatprep.mubr.f32.mxu0 0.0
      %2433 = vmatmul.mubr.f32.gmra.mxu0 %v2291
      %v2434 = vpop.f32.mrf.mxu0
      %v2435 = vadd.f32 0.0, %v2434
      %v2436 = vpop.f32.mrf.mxu0
      %2437 = vdwg.mxu0
      %v2438 = vadd.f32 %v2210, %v2360
      %v2439 = vadd.f32 %v2211, %v2365
      %v2440 = vadd.f32 %v2212, %v2370
      %v2441 = vadd.f32 %v2213, %v2375
      %v2442 = vadd.f32 %v2214, %v2380
      %v2443 = vadd.f32 %v2215, %v2385
      %v2444 = vadd.f32 %v2216, %v2390
      %v2445 = vadd.f32 %v2217, %v2395
      %v2446 = vadd.f32 %v2218, %v2400
      %v2447 = vadd.f32 %v2219, %v2405
      %v2448 = vadd.f32 %v2220, %v2410
      %v2449 = vadd.f32 %v2221, %v2415
      %v2450 = vadd.f32 %v2222, %v2420
      %v2451 = vadd.f32 %v2223, %v2425
      %v2452 = vadd.f32 %v2224, %v2430
      %v2453 = vadd.f32 %v2225, %v2435
      %v2454 = vld [vmem:[%s4] sm:$0x1]
      %v2456 = vlaneseq
      %v2457 = vshrl.u32 %v2456, 7
      %v2458 = vsub.s32 0, %v2457
      %v2459 = vrot.slane %v2454, %v2458
      %v2461 = vadd.f32 %v2438, %v2459
      %v2462 = vadd.f32 %v2439, %v2459
      %v2463 = vadd.f32 %v2440, %v2459
      %v2464 = vadd.f32 %v2441, %v2459
      %v2465 = vadd.f32 %v2442, %v2459
      %v2466 = vadd.f32 %v2443, %v2459
      %v2467 = vadd.f32 %v2444, %v2459
      %v2468 = vadd.f32 %v2445, %v2459
      %v2469 = vadd.f32 %v2446, %v2459
      %v2470 = vadd.f32 %v2447, %v2459
      %v2471 = vadd.f32 %v2448, %v2459
      %v2472 = vadd.f32 %v2449, %v2459
      %v2473 = vadd.f32 %v2450, %v2459
      %v2474 = vadd.f32 %v2451, %v2459
      %v2475 = vadd.f32 %v2452, %v2459
      %v2476 = vadd.f32 %v2453, %v2459
      %v2477 = vmax.f32 %v2461, 0.0
      %v2478 = vmax.f32 %v2462, 0.0
      %v2479 = vmax.f32 %v2463, 0.0
      %v2480 = vmax.f32 %v2464, 0.0
      %v2481 = vmax.f32 %v2465, 0.0
      %v2482 = vmax.f32 %v2466, 0.0
      %v2483 = vmax.f32 %v2467, 0.0
      %v2484 = vmax.f32 %v2468, 0.0
      %v2485 = vmax.f32 %v2469, 0.0
      %v2486 = vmax.f32 %v2470, 0.0
      %v2487 = vmax.f32 %v2471, 0.0
      %v2488 = vmax.f32 %v2472, 0.0
      %v2489 = vmax.f32 %v2473, 0.0
      %v2490 = vmax.f32 %v2474, 0.0
      %v2491 = vmax.f32 %v2475, 0.0
      %v2492 = vmax.f32 %v2476, 0.0
      %v2493 = vld [vmem:[%s5] sm:$0xff]
      %v2494 = vld [vmem:[%s5 + $0x8] sm:$0xff]
      %v2496 = vsel %vm252, %v2477, 0
      %v2499 = vsel %vm252, %v2478, 0
      %v2502 = vsel %vm252, %v2479, 0
      %v2505 = vsel %vm252, %v2480, 0
      %v2508 = vsel %vm252, %v2481, 0
      %v2511 = vsel %vm252, %v2482, 0
      %v2514 = vsel %vm252, %v2483, 0
      %v2517 = vsel %vm252, %v2484, 0
      %v2520 = vsel %vm252, %v2485, 0
      %v2523 = vsel %vm252, %v2486, 0
      %v2526 = vsel %vm252, %v2487, 0
      %v2529 = vsel %vm252, %v2488, 0
      %v2532 = vsel %vm252, %v2489, 0
      %v2535 = vsel %vm252, %v2490, 0
      %v2538 = vsel %vm252, %v2491, 0
      %v2541 = vsel %vm252, %v2492, 0
      %2543 = vmatprep.subr.mxu0 0.0
      %2544 = vmatpush1.msra.mxu0 0.0
      %2545 = vmatprep.subr.mxu0 0.0
      %2546 = vmatpush1.msra.mxu0 0.0
      %2547 = vmatprep.subr.mxu0 0.0
      %2548 = vmatpush1.msra.mxu0 0.0
      %2549 = vmatprep.subr.mxu0 0.0
      %2550 = vmatpush1.msra.mxu0 0.0
      %2551 = vmatprep.subr.mxu0 0.0
      %2552 = vmatpush1.msra.mxu0 0.0
      %2553 = vmatprep.subr.mxu0 0.0
      %2554 = vmatpush1.msra.mxu0 0.0
      %2555 = vmatprep.subr.mxu0 0.0
      %2556 = vmatpush1.msra.mxu0 0.0
      %2557 = vmatprep.subr.mxu0 0.0
      %2558 = vmatpush1.msra.mxu0 0.0
      %2559 = vmatprep.subr.mxu0 0.0
      %2560 = vmatpush1.msra.mxu0 0.0
      %2561 = vmatprep.subr.mxu0 0.0
      %2562 = vmatpush1.msra.mxu0 0.0
      %2563 = vmatprep.subr.mxu0 0.0
      %2564 = vmatpush1.msra.mxu0 0.0
      %2565 = vmatprep.subr.mxu0 0.0
      %2566 = vmatpush1.msra.mxu0 0.0
      %2567 = vmatprep.subr.mxu0 0.0
      %2568 = vmatpush1.msra.mxu0 0.0
      %2569 = vmatprep.subr.mxu0 0.0
      %2570 = vmatpush1.msra.mxu0 0.0
      %2571 = vmatprep.subr.mxu0 0.0
      %2572 = vmatpush1.msra.mxu0 %v2494
      %2573 = vmatprep.subr.mxu0 0.0
      %2574 = vmatpush1.msra.mxu0 %v2493
      %2575 = vmatprep.subr.mxu0 0.0
      %2576 = vmatpush2.msra.mxu0 0.0
      %2577 = vmatprep.subr.mxu0 0.0
      %2578 = vmatpush2.msra.mxu0 0.0
      %2579 = vmatprep.subr.mxu0 0.0
      %2580 = vmatpush2.msra.mxu0 0.0
      %2581 = vmatprep.subr.mxu0 0.0
      %2582 = vmatpush2.msra.mxu0 0.0
      %2583 = vmatprep.subr.mxu0 0.0
      %2584 = vmatpush2.msra.mxu0 0.0
      %2585 = vmatprep.subr.mxu0 0.0
      %2586 = vmatpush2.msra.mxu0 0.0
      %2587 = vmatprep.subr.mxu0 0.0
      %2588 = vmatpush2.msra.mxu0 0.0
      %2589 = vmatprep.subr.mxu0 0.0
      %2590 = vmatpush2.msra.mxu0 0.0
      %2591 = vmatprep.subr.mxu0 0.0
      %2592 = vmatpush2.msra.mxu0 0.0
      %2593 = vmatprep.subr.mxu0 0.0
      %2594 = vmatpush2.msra.mxu0 0.0
      %2595 = vmatprep.subr.mxu0 0.0
      %2596 = vmatpush2.msra.mxu0 0.0
      %2597 = vmatprep.subr.mxu0 0.0
      %2598 = vmatpush2.msra.mxu0 0.0
      %2599 = vmatprep.subr.mxu0 0.0
      %2600 = vmatpush2.msra.mxu0 0.0
      %2601 = vmatprep.subr.mxu0 0.0
      %2602 = vmatpush2.msra.mxu0 0.0
      %2603 = vmatprep.subr.mxu0 0.0
      %2604 = vmatpush2.msra.mxu0 0.0
      %2605 = vmatprep.subr.mxu0 0.0
      %2606 = vmatpush2.msra.mxu0 0.0
      %2607 = vmatprep.mubr.f32.mxu0 0.0
      %2608 = vmatmul.mubr.f32.gmra.mxu0 %v2496
      %v2609 = vpop.f32.mrf.mxu0
      %v2610 = vadd.f32 0.0, %v2609
      %v2611 = vpop.f32.mrf.mxu0
      %2612 = vmatprep.mubr.f32.mxu0 0.0
      %2613 = vmatmul.mubr.f32.gmra.mxu0 %v2499
      %v2614 = vpop.f32.mrf.mxu0
      %v2615 = vadd.f32 0.0, %v2614
      %v2616 = vpop.f32.mrf.mxu0
      %2617 = vmatprep.mubr.f32.mxu0 0.0
      %2618 = vmatmul.mubr.f32.gmra.mxu0 %v2502
      %v2619 = vpop.f32.mrf.mxu0
      %v2620 = vadd.f32 0.0, %v2619
      %v2621 = vpop.f32.mrf.mxu0
      %2622 = vmatprep.mubr.f32.mxu0 0.0
      %2623 = vmatmul.mubr.f32.gmra.mxu0 %v2505
      %v2624 = vpop.f32.mrf.mxu0
      %v2625 = vadd.f32 0.0, %v2624
      %v2626 = vpop.f32.mrf.mxu0
      %2627 = vmatprep.mubr.f32.mxu0 0.0
      %2628 = vmatmul.mubr.f32.gmra.mxu0 %v2508
      %v2629 = vpop.f32.mrf.mxu0
      %v2630 = vadd.f32 0.0, %v2629
      %v2631 = vpop.f32.mrf.mxu0
      %2632 = vmatprep.mubr.f32.mxu0 0.0
      %2633 = vmatmul.mubr.f32.gmra.mxu0 %v2511
      %v2634 = vpop.f32.mrf.mxu0
      %v2635 = vadd.f32 0.0, %v2634
      %v2636 = vpop.f32.mrf.mxu0
      %2637 = vmatprep.mubr.f32.mxu0 0.0
      %2638 = vmatmul.mubr.f32.gmra.mxu0 %v2514
      %v2639 = vpop.f32.mrf.mxu0
      %v2640 = vadd.f32 0.0, %v2639
      %v2641 = vpop.f32.mrf.mxu0
      %2642 = vmatprep.mubr.f32.mxu0 0.0
      %2643 = vmatmul.mubr.f32.gmra.mxu0 %v2517
      %v2644 = vpop.f32.mrf.mxu0
      %v2645 = vadd.f32 0.0, %v2644
      %v2646 = vpop.f32.mrf.mxu0
      %2647 = vmatprep.mubr.f32.mxu0 0.0
      %2648 = vmatmul.mubr.f32.gmra.mxu0 %v2520
      %v2649 = vpop.f32.mrf.mxu0
      %v2650 = vadd.f32 0.0, %v2649
      %v2651 = vpop.f32.mrf.mxu0
      %2652 = vmatprep.mubr.f32.mxu0 0.0
      %2653 = vmatmul.mubr.f32.gmra.mxu0 %v2523
      %v2654 = vpop.f32.mrf.mxu0
      %v2655 = vadd.f32 0.0, %v2654
      %v2656 = vpop.f32.mrf.mxu0
      %2657 = vmatprep.mubr.f32.mxu0 0.0
      %2658 = vmatmul.mubr.f32.gmra.mxu0 %v2526
      %v2659 = vpop.f32.mrf.mxu0
      %v2660 = vadd.f32 0.0, %v2659
      %v2661 = vpop.f32.mrf.mxu0
      %2662 = vmatprep.mubr.f32.mxu0 0.0
      %2663 = vmatmul.mubr.f32.gmra.mxu0 %v2529
      %v2664 = vpop.f32.mrf.mxu0
      %v2665 = vadd.f32 0.0, %v2664
      %v2666 = vpop.f32.mrf.mxu0
      %2667 = vmatprep.mubr.f32.mxu0 0.0
      %2668 = vmatmul.mubr.f32.gmra.mxu0 %v2532
      %v2669 = vpop.f32.mrf.mxu0
      %v2670 = vadd.f32 0.0, %v2669
      %v2671 = vpop.f32.mrf.mxu0
      %2672 = vmatprep.mubr.f32.mxu0 0.0
      %2673 = vmatmul.mubr.f32.gmra.mxu0 %v2535
      %v2674 = vpop.f32.mrf.mxu0
      %v2675 = vadd.f32 0.0, %v2674
      %v2676 = vpop.f32.mrf.mxu0
      %2677 = vmatprep.mubr.f32.mxu0 0.0
      %2678 = vmatmul.mubr.f32.gmra.mxu0 %v2538
      %v2679 = vpop.f32.mrf.mxu0
      %v2680 = vadd.f32 0.0, %v2679
      %v2681 = vpop.f32.mrf.mxu0
      %2682 = vmatprep.mubr.f32.mxu0 0.0
      %2683 = vmatmul.mubr.f32.gmra.mxu0 %v2541
      %v2684 = vpop.f32.mrf.mxu0
      %v2685 = vadd.f32 0.0, %v2684
      %v2686 = vpop.f32.mrf.mxu0
      %2687 = vdwg.mxu0
      %vm2688 = vcmask 64512
      %2689 = vst.msk [vmem:[%s251] sm:$0xff] %vm2688, %v2610
      %2690 = vst.msk [vmem:[%s251 + $0x8] sm:$0xff] %vm2688, %v2615
      %2691 = vst.msk [vmem:[%s251 + $0x10] sm:$0xff] %vm2688, %v2620
      %2692 = vst.msk [vmem:[%s251 + $0x18] sm:$0xff] %vm2688, %v2625
      %2693 = vst.msk [vmem:[%s251 + $0x20] sm:$0xff] %vm2688, %v2630
      %2694 = vst.msk [vmem:[%s251 + $0x28] sm:$0xff] %vm2688, %v2635
      %2695 = vst.msk [vmem:[%s251 + $0x30] sm:$0xff] %vm2688, %v2640
      %2696 = vst.msk [vmem:[%s251 + $0x38] sm:$0xff] %vm2688, %v2645
      %2697 = vst.msk [vmem:[%s251 + $0x40] sm:$0xff] %vm2688, %v2650
      %2698 = vst.msk [vmem:[%s251 + $0x48] sm:$0xff] %vm2688, %v2655
      %2699 = vst.msk [vmem:[%s251 + $0x50] sm:$0xff] %vm2688, %v2660
      %2700 = vst.msk [vmem:[%s251 + $0x58] sm:$0xff] %vm2688, %v2665
      %2701 = vst.msk [vmem:[%s251 + $0x60] sm:$0xff] %vm2688, %v2670
      %2702 = vst.msk [vmem:[%s251 + $0x68] sm:$0xff] %vm2688, %v2675
      %2703 = vst.msk [vmem:[%s251 + $0x70] sm:$0xff] %vm2688, %v2680
      %2704 = vst.msk [vmem:[%s251 + $0x78] sm:$0xff] %vm2688, %v2685
      %p2705 = scmp.lt.s32.totalorder %s17, 1
      %s2706 = scalar_select %p2705, %s17, 1
      %s2707 = smul.addr %s2706, 16
      %s2708 = smul.addr %s2707, 8
      %s2709 = scalar_lea.vmem %s6, %s2708
      // Predicated region
      $region45: #{tpu_custom_call.1} parent=43 // pred_check
        %p2710 = pneg %p166
      $region46: #{tpu_custom_call.1} parent=43 // pred_check_branch
        %2712 = sbr.rel (%p2710) target = $region48
      $region47: #{tpu_custom_call.1} parent=43 // pred_region
        _
      $region48: #{tpu_custom_call.1} parent=43 // pred_fallthru
        _
    $region44: #{tpu_custom_call.1} parent=5 // pred_fallthru
      _
    %p2713 = scmp.le.s32.totalorder 2, %s12
    // Predicated region
    $region49: #{tpu_custom_call.1} parent=5 // pred_check
      %p2714 = pneg %p2713
    $region50: #{tpu_custom_call.1} parent=5 // pred_check_branch
      %2716 = sbr.rel (%p2714) target = $region52
    $region51: #{tpu_custom_call.1} parent=5 // pred_region
      %s2717 = ssub.s32 %s12, 2
      // Predicated region
      $region53: #{tpu_custom_call.1} parent=51 // pred_check
        %p2718 = pneg %p172
      $region54: #{tpu_custom_call.1} parent=51 // pred_check_branch
        %2720 = sbr.rel (%p2718) target = $region56
      $region55: #{tpu_custom_call.1} parent=51 // pred_region
        %p2721 = scmp.lt.s32.totalorder %s18, 1
        %s2722 = scalar_select %p2721, %s18, 1
        %s2723 = smul.addr %s2722, 16
        %s2724 = smul.addr %s2723, 8
        %s2725 = scalar_lea.vmem %s6, %s2724
      $region56: #{tpu_custom_call.1} parent=51 // pred_fallthru
        _
    $region52: #{tpu_custom_call.1} parent=5 // pred_fallthru
      _
  $region6: #{tpu_custom_call.1} parent=0 // loop_footer
    %s16 = sadd.s32 1, %s12
  $region7: #{tpu_custom_call.1} parent=0 // loop_footer_branch
    %11 = sbr.rel target = $region3
  $region8: #{tpu_custom_call.1} parent=0 // loop_exit
    _

</llo_original>
